<compile_context>
chip_gen: v7x
topology: tpu7x:2x2x1
jax: 0.10.0
libtpu: 0.0.40
codegen_flags: <defaults>
</compile_context>

<pallas_src>
import functools

import jax
import jax.numpy as jnp
from jax.experimental import pallas as pl
from jax.experimental.pallas import tpu as pltpu


# ----------------------------------------------------------------------------- kernel
def map_encoder_kernel(x01_ref, meta_ref,
                       w1_ref, b1_ref, w2_ref, gn_pro_ref,
                       w_meta_ref, gn_meta_ref,
                       w_fuse_ref, adj_ref, w_ctr2_ref, gn_fuse_ref,
                       out_ref,
                       feat_ref,
                       *, c_real, c_pad, n_edge_types):
    f32 = jnp.float32
    bf16 = jnp.bfloat16
    inv_c = 1.0 / float(c_real)
    it = pl.program_id(0)

    # lane mask over the real channel count (hoisted; used by every GroupNorm)
    lane_mask = jax.lax.broadcasted_iota(jnp.int32, (1, c_pad), 1) < c_real

    def dot(a, b):
        # bf16 operands, f32 accumulation on the MXU.
        return jnp.dot(a.astype(bf16), b, preferred_element_type=f32)

    def gn(x, gamma, beta, eps=1e-5):
        # GroupNorm(num_groups=1), two-pass, masked to the real channel count.
        # Padded lanes of x are exactly 0 and gamma/beta are zero-padded, so the
        # padded output lanes stay exactly 0.
        mean = jnp.sum(x, axis=-1, keepdims=True) * inv_c
        d = jnp.where(lane_mask, x - mean, 0.0)
        var = jnp.sum(d * d, axis=-1, keepdims=True) * inv_c
        return (x - mean) * jax.lax.rsqrt(var + eps) * gamma + beta

    # ---------------- prologue (grid step 0 only): input / seg / meta ----------
    @pl.when(it == 0)
    def _():
        # layer 1: [ctrs | feats] @ block-diag(inp_w1, seg_w1) + [b_inp | b_seg]
        # (a K=4 MXU push, executed once; MXU has slack here)
        y1 = jnp.maximum(dot(x01_ref[...], w1_ref[...]) + b1_ref[...], 0.0)
        # layer 2 (bias-free): block-diag(inp_w2, seg_w2)
        y2 = dot(y1, w2_ref[...])                                  # (N, 2*CP)
        gnp = gn_pro_ref[...]                                      # (4, CP)
        h = gn(y2[:, :c_pad], gnp[0:1, :], gnp[1:2, :])
        s = gn(y2[:, c_pad:], gnp[2:3, :], gnp[3:4, :])
        feat0 = jnp.maximum(h + s, 0.0)
        # meta columns sit in the (exactly zero) padded lanes C..C+4 of the
        # matmul OPERAND only — never added into feat itself, which would break
        # the GroupNorm zero-lane invariant.
        mcat = feat0 + meta_ref[...]                               # (N, CP)
        gnm = gn_meta_ref[...]                                     # (2, CP)
        feat_ref[...] = jnp.maximum(
            gn(dot(mcat, w_meta_ref[...]), gnm[0:1, :], gnm[1:2, :]), 0.0)

    # ---------------- fusion (graph-conv) iteration `it` -----------------------
    feat = feat_ref[...]
    res = feat
    # one wide matmul produces the ctr message and all E edge messages
    msgs = dot(feat, w_fuse_ref[...])                              # (N, (E+1)*CP)
    # single fused adjacency push: vstack the edge messages (128-lane-aligned,
    # N % 8 == 0 slices -> pure vreg placement), hstacked adjacency as LHS.
    msg_v = jnp.concatenate(
        [msgs[:, (e + 1) * c_pad:(e + 2) * c_pad] for e in range(n_edge_types)],
        axis=0).astype(bf16)                                       # (E*N, CP)
    # dense equivalent of sum_e index_add_(0, u, W_e(feat[v]))
    temp = msgs[:, :c_pad] + jnp.dot(adj_ref[...], msg_v,
                                     preferred_element_type=f32)   # (N, CP)
    g = gn_fuse_ref[...]                                           # (4, CP)
    t = jnp.maximum(gn(temp, g[0:1, :], g[1:2, :]), 0.0)           # norm + relu
    t = gn(dot(t, w_ctr2_ref[...]), g[2:3, :], g[3:4, :])          # ctr2
    new_feat = jnp.maximum(t + res, 0.0)                           # residual + relu
    feat_ref[...] = new_feat

    @pl.when(it == pl.num_programs(0) - 1)
    def _():
        out_ref[...] = new_feat


# ----------------------------------------------------------------------------- packing
def _round_up(x, m):
    return ((x + m - 1) // m) * m


def _pack_params(params, adj, n_map, n_iters):
    """Pad channels to 128 lanes and concatenate weights for the fused matmuls."""
    C = n_map
    CP = _round_up(max(C + 4, 128), 128)   # +4 so the meta columns fit in padded lanes
    E, N = adj.shape[0], adj.shape[1]
    f32, bf16 = jnp.float32, jnp.bfloat16

    # prologue layer 1: block-diag over the two 2->C branches
    w1 = jnp.zeros((4, 2 * CP), f32)
    w1 = w1.at[0:2, 0:C].set(params['inp_w1']).at[2:4, CP:CP + C].set(params['seg_w1'])
    b1 = jnp.zeros((1, 2 * CP), f32)
    b1 = b1.at[:, 0:C].set(params['inp_b1']).at[:, CP:CP + C].set(params['seg_b1'])
    # prologue layer 2: block-diag over the two C->C branches (bias-free)
    w2 = jnp.zeros((2 * CP, 2 * CP), f32)
    w2 = w2.at[0:C, 0:C].set(params['inp_w2']).at[CP:CP + C, CP:CP + C].set(params['seg_w2'])

    def padc(v):   # (1, C) -> (1, CP), zero pad (gamma padded with 0 on purpose)
        return jnp.zeros((1, CP), f32).at[:, 0:C].set(v)

    gn_pro = jnp.concatenate([padc(params['inp_g']), padc(params['inp_be']),
                              padc(params['seg_g']), padc(params['seg_be'])], axis=0)

    # meta: Linear(C+4, C) with the 4 meta-input rows relocated to lanes C..C+4
    w_meta = jnp.zeros((CP, CP), f32)
    w_meta = w_meta.at[0:C, 0:C].set(params['meta_wf']).at[C:C + 4, 0:C].set(params['meta_wm'])
    gn_meta = jnp.concatenate([padc(params['meta_g']), padc(params['meta_be'])], axis=0)

    # fusion weights: concat [ctr_w[i] | edge_w[i,0] | ... | edge_w[i,E-1]]
    w_fuse = jnp.zeros((n_iters, CP, (E + 1) * CP), f32)
    w_fuse = w_fuse.at[:, 0:C, 0:C].set(params['ctr_w'])
    for e in range(E):
        col = (e + 1) * CP
        w_fuse = w_fuse.at[:, 0:C, col:col + C].set(params['edge_w'][:, e])
    w_ctr2 = jnp.zeros((n_iters, CP, CP), f32).at[:, 0:C, 0:C].set(params['ctr2_w'])

    def padc_i(v):  # (n_iters, 1, C) -> (n_iters, 1, CP)
        return jnp.zeros((n_iters, 1, CP), f32).at[:, :, 0:C].set(v)

    gn_fuse = jnp.concatenate([padc_i(params['norm_g']), padc_i(params['norm_b']),
                               padc_i(params['ctr2_g']), padc_i(params['ctr2_b'])], axis=1)

    # hstacked adjacency: row u = [A_0[u,:], A_1[u,:], ..., A_{E-1}[u,:]]
    # (small-integer edge multiplicities -> exact in bf16)
    adj_h = jnp.transpose(adj, (1, 0, 2)).reshape(N, E * N)

    return dict(cp=CP,
                w1=w1.astype(bf16), b1=b1, w2=w2.astype(bf16), gn_pro=gn_pro,
                w_meta=w_meta.astype(bf16), gn_meta=gn_meta,
                w_fuse=w_fuse.astype(bf16), w_ctr2=w_ctr2.astype(bf16),
                gn_fuse=gn_fuse, adj_h=adj_h.astype(bf16))


# ----------------------------------------------------------------------------- wrapper
def map_encoder(ctrs, feats, meta, adj, params, n_iters=4):
    N = ctrs.shape[0]
    C = params['inp_w2'].shape[0]
    E = adj.shape[0]
    packed = _pack_params(params, adj, C, n_iters)
    CP = packed['cp']

    x01 = jnp.concatenate([ctrs, feats], axis=1)                          # (N, 4)
    # meta placed in the padded lanes C..C+4 (consumed via one VPU add in-kernel)
    meta_shift = jnp.zeros((N, CP), jnp.float32).at[:, C:C + meta.shape[1]].set(meta)

    args = (x01, meta_shift,
            packed['w1'], packed['b1'], packed['w2'], packed['gn_pro'],
            packed['w_meta'], packed['gn_meta'],
            packed['w_fuse'], packed['adj_h'], packed['w_ctr2'], packed['gn_fuse'])

    def c2(shape):  # constant (reused every grid step) full-array 2-D block
        return pl.BlockSpec(shape, lambda i: (0, 0))

    in_specs = [
        c2((N, 4)),                       # x01         (used at step 0 only)
        c2((N, CP)),                      # meta_shift  (used at step 0 only)
        c2((4, 2 * CP)),                  # w1
        c2((1, 2 * CP)),                  # b1
        c2((2 * CP, 2 * CP)),             # w2
        c2((4, CP)),                      # gn_pro
        c2((CP, CP)),                     # w_meta
        c2((2, CP)),                      # gn_meta
        pl.BlockSpec((None, CP, (E + 1) * CP), lambda i: (i, 0, 0)),  # w_fuse  (streamed)
        c2((N, E * N)),                   # adj_h (hstacked adjacency)
        pl.BlockSpec((None, CP, CP), lambda i: (i, 0, 0)),            # w_ctr2  (streamed)
        pl.BlockSpec((None, 4, CP), lambda i: (i, 0, 0)),             # gn_fuse (streamed)
    ]
    out_spec = pl.BlockSpec((N, CP), lambda i: (0, 0))                # lane-dense output

    kernel = functools.partial(map_encoder_kernel, c_real=C, c_pad=CP,
                               n_edge_types=E)
    out_pad = pl.pallas_call(
        kernel,
        out_shape=jax.ShapeDtypeStruct((N, CP), jnp.float32),
        grid_spec=pltpu.PrefetchScalarGridSpec(
            num_scalar_prefetch=0,
            grid=(n_iters,),
            in_specs=in_specs,
            out_specs=out_spec,
            scratch_shapes=[pltpu.VMEM((N, CP), jnp.float32)]),       # feat carry
        compiler_params=pltpu.CompilerParams(
            dimension_semantics=("arbitrary",),                       # sequential deps
            vmem_limit_bytes=32 * 1024 * 1024),
    )(*args)
    return out_pad[:, :C]


# ----------------------------------------------------------------------------- reference (pure JAX)
def reference_forward(ctrs, feats, meta, adj, p, n_iters=4):
    """Direct transliteration of the PyTorch module (unfused, unpadded), with
    matmul operands in bf16 / f32 accumulation to match the kernel's precision."""
    def mm(a, b):
        return jnp.dot(a.astype(jnp.bfloat16), b.astype(jnp.bfloat16),
                       preferred_element_type=jnp.float32)

    def gn1(x, g, b, eps=1e-5):
        mean = jnp.mean(x, axis=-1, keepdims=True)
        var = jnp.mean(jnp.square(x - mean), axis=-1, keepdims=True)
        return (x - mean) * jax.lax.rsqrt(var + eps) * g + b

    h = jnp.maximum(mm(ctrs, p['inp_w1']) + p['inp_b1'], 0.0)
    h = gn1(mm(h, p['inp_w2']), p['inp_g'], p['inp_be'])
    s = jnp.maximum(mm(feats, p['seg_w1']) + p['seg_b1'], 0.0)
    s = gn1(mm(s, p['seg_w2']), p['seg_g'], p['seg_be'])
    feat = jnp.maximum(h + s, 0.0)
    m = mm(feat, p['meta_wf']) + mm(meta, p['meta_wm'])
    feat = jnp.maximum(gn1(m, p['meta_g'], p['meta_be']), 0.0)
    res = feat
    for i in range(n_iters):
        temp = mm(feat, p['ctr_w'][i])
        for e in range(adj.shape[0]):
            temp = temp + mm(adj[e], mm(feat, p['edge_w'][i, e]))
        t = jnp.maximum(gn1(temp, p['norm_g'][i], p['norm_b'][i]), 0.0)
        t = gn1(mm(t, p['ctr2_w'][i]), p['ctr2_g'][i], p['ctr2_b'][i])
        feat = jnp.maximum(t + res, 0.0)
        res = feat
    return feat


# ----------------------------------------------------------------------------- params
def init_params(key, n_map, num_scales, n_iters=4):
    E = 2 * num_scales + 2                       # pre0..preS-1, suc0..sucS-1, left, right
    ks = iter(jax.random.split(key, 40))

    def w(shape, scale=0.2):
        return (scale * jax.random.normal(next(ks), shape)).astype(jnp.float32)

    p = {}
    # input branch: nn.Linear(2,M) (+bias) -> Linear(M,M, bias=False) + GN(1,M)
    p['inp_w1'] = w((2, n_map));  p['inp_b1'] = w((1, n_map))
    p['inp_w2'] = w((n_map, n_map))
    p['inp_g'] = 1.0 + w((1, n_map), 0.05);  p['inp_be'] = w((1, n_map), 0.05)
    # seg branch
    p['seg_w1'] = w((2, n_map));  p['seg_b1'] = w((1, n_map))
    p['seg_w2'] = w((n_map, n_map))
    p['seg_g'] = 1.0 + w((1, n_map), 0.05);  p['seg_be'] = w((1, n_map), 0.05)
    # meta: Linear(M+4, M, bias=False) + GN(1,M) + ReLU  (weight stored pre-split)
    p['meta_wf'] = w((n_map, n_map));  p['meta_wm'] = w((4, n_map))
    p['meta_g'] = 1.0 + w((1, n_map), 0.05);  p['meta_be'] = w((1, n_map), 0.05)
    # fuse blocks (4 iterations)
    p['ctr_w'] = w((n_iters, n_map, n_map))
    p['edge_w'] = w((n_iters, E, n_map, n_map))
    p['norm_g'] = 1.0 + w((n_iters, 1, n_map), 0.05)
    p['norm_b'] = w((n_iters, 1, n_map), 0.05)
    p['ctr2_w'] = w((n_iters, n_map, n_map))
    p['ctr2_g'] = 1.0 + w((n_iters, 1, n_map), 0.05)
    p['ctr2_b'] = w((n_iters, 1, n_map), 0.05)
    return p


# ----------------------------------------------------------------------------- main
if __name__ == "__main__":
    N, n_map, num_scales = 16, 32, 2
    E = 2 * num_scales + 2
    n_edges_per_type = 24

    key = jax.random.PRNGKey(0)
    k_graph, k_param = jax.random.split(key)
    gk = iter(jax.random.split(k_graph, 32))

    # graph node features
    ctrs = jax.random.normal(next(gk), (N, 2), jnp.float32)          # graph['ctrs'] (concat)
    feats = jax.random.normal(next(gk), (N, 2), jnp.float32)         # graph['feats']
    turn = jax.random.normal(next(gk), (N, 2), jnp.float32)
    control = (jax.random.uniform(next(gk), (N,)) > 0.5).astype(jnp.float32)
    intersect = (jax.random.uniform(next(gk), (N,)) > 0.5).astype(jnp.float32)
    meta = jnp.concatenate([turn, control[:, None], intersect[:, None]], axis=1)  # (N, 4)

    # edge types [pre0, suc0, pre1, suc1, left, right] as dense adjacency matrices
    adj_list = []
    for _ in range(E):
        u = jax.random.randint(next(gk), (n_edges_per_type,), 0, N)
        v = jax.random.randint(next(gk), (n_edges_per_type,), 0, N)
        adj_list.append(jnp.zeros((N, N), jnp.float32).at[u, v].add(1.0))
    adj = jnp.stack(adj_list)                                        # (E, N, N)

    params = init_params(k_param, n_map, num_scales)

    out = map_encoder(ctrs, feats, meta, adj, params)
    out = jax.block_until_ready(out)

    ref = reference_forward(ctrs, feats, meta, adj, params)
    assert out.shape == (N, n_map), out.shape
    max_err = float(jnp.max(jnp.abs(out - ref)))
    assert jnp.allclose(out, ref, atol=3e-2, rtol=3e-2), f"max abs err = {max_err}"

    print("KERNEL_OK")
</pallas_src>

<mosaic_0001>
module attributes {stable_mosaic.version = 11 : i64} {
  func.func @map_encoder_kernel(%arg0: i32, %arg1: memref<16x4xf32, #tpu.memory_space<vmem>>, %arg2: memref<16x128xf32, #tpu.memory_space<vmem>>, %arg3: memref<4x256xbf16, #tpu.memory_space<vmem>>, %arg4: memref<1x256xf32, #tpu.memory_space<vmem>>, %arg5: memref<256x256xbf16, #tpu.memory_space<vmem>>, %arg6: memref<4x128xf32, #tpu.memory_space<vmem>>, %arg7: memref<128x128xbf16, #tpu.memory_space<vmem>>, %arg8: memref<2x128xf32, #tpu.memory_space<vmem>>, %arg9: memref<1x128x896xbf16, #tpu.memory_space<vmem>>, %arg10: memref<16x96xbf16, #tpu.memory_space<vmem>>, %arg11: memref<1x128x128xbf16, #tpu.memory_space<vmem>>, %arg12: memref<1x4x128xf32, #tpu.memory_space<vmem>>, %arg13: memref<16x128xf32, #tpu.memory_space<vmem>>, %arg14: memref<16x128xf32, #tpu.memory_space<vmem>>) attributes {dimension_semantics = [#tpu.dimension_semantics<arbitrary>], iteration_bounds = array<i64: 4>, scalar_prefetch = 0 : i64, scratch_operands = 1 : i64, tpu.core_type = #tpu.core_type<tc>, window_params = [{pipeline_mode = #tpu.pipeline_mode<synchronous>, transform_indices = @transform_0, window_bounds = array<i64: 16, 4>}, {pipeline_mode = #tpu.pipeline_mode<synchronous>, transform_indices = @transform_1, window_bounds = array<i64: 16, 128>}, {pipeline_mode = #tpu.pipeline_mode<synchronous>, transform_indices = @transform_2, window_bounds = array<i64: 4, 256>}, {pipeline_mode = #tpu.pipeline_mode<synchronous>, transform_indices = @transform_3, window_bounds = array<i64: 1, 256>}, {pipeline_mode = #tpu.pipeline_mode<synchronous>, transform_indices = @transform_4, window_bounds = array<i64: 256, 256>}, {pipeline_mode = #tpu.pipeline_mode<synchronous>, transform_indices = @transform_5, window_bounds = array<i64: 4, 128>}, {pipeline_mode = #tpu.pipeline_mode<synchronous>, transform_indices = @transform_6, window_bounds = array<i64: 128, 128>}, {pipeline_mode = #tpu.pipeline_mode<synchronous>, transform_indices = @transform_7, window_bounds = array<i64: 2, 128>}, {transform_indices = @transform_8, window_bounds = array<i64: 1, 128, 896>}, {pipeline_mode = #tpu.pipeline_mode<synchronous>, transform_indices = @transform_9, window_bounds = array<i64: 16, 96>}, {transform_indices = @transform_10, window_bounds = array<i64: 1, 128, 128>}, {transform_indices = @transform_11, window_bounds = array<i64: 1, 4, 128>}, {pipeline_mode = #tpu.pipeline_mode<synchronous>, transform_indices = @transform_12, window_bounds = array<i64: 16, 128>}]} {
    %0 = tpu.iota {dimensions = array<i32: 1>} : vector<1x128xi32>
    %c32_i32 = arith.constant 32 : i32
    %1 = vector.broadcast %c32_i32 : i32 to vector<1x128xi32>
    %2 = arith.cmpi slt, %0, %1 : vector<1x128xi32>
    %c0_i32 = arith.constant 0 : i32
    %3 = arith.cmpi eq, %arg0, %c0_i32 : i32
    %4 = arith.extui %3 : i1 to i32
    %c0_i32_0 = arith.constant 0 : i32
    %5 = arith.cmpi ne, %4, %c0_i32_0 : i32
    scf.if %5 {
      %c0_32 = arith.constant 0 : index
      %c0_33 = arith.constant 0 : index
      %94 = vector.load %arg1[%c0_32, %c0_33] : memref<16x4xf32, #tpu.memory_space<vmem>>, vector<16x4xf32>
      %c0_34 = arith.constant 0 : index
      %c0_35 = arith.constant 0 : index
      %95 = vector.load %arg3[%c0_34, %c0_35] : memref<4x256xbf16, #tpu.memory_space<vmem>>, vector<4x256xbf16>
      %96 = arith.truncf %94 : vector<16x4xf32> to vector<16x4xbf16>
      %cst_36 = arith.constant dense<0.000000e+00> : vector<16x256xf32>
      %97 = tpu.matmul %96, %95, %cst_36 {dimension_numbers = #tpu.dot_dimension_numbers<[1], [0], [0], [1], [0, 0, 1, 1], [], []>} : vector<16x4xbf16>, vector<4x256xbf16>, vector<16x256xf32> -> vector<16x256xf32>
      %c0_37 = arith.constant 0 : index
      %c0_38 = arith.constant 0 : index
      %98 = vector.load %arg4[%c0_37, %c0_38] : memref<1x256xf32, #tpu.memory_space<vmem>>, vector<1x256xf32>
      %99 = vector.broadcast %98 : vector<1x256xf32> to vector<16x256xf32>
      %100 = arith.addf %97, %99 : vector<16x256xf32>
      %cst_39 = arith.constant 0.000000e+00 : f32
      %101 = vector.broadcast %cst_39 : f32 to vector<16x256xf32>
      %102 = arith.maximumf %100, %101 : vector<16x256xf32>
      %c0_40 = arith.constant 0 : index
      %c0_41 = arith.constant 0 : index
      %103 = vector.load %arg5[%c0_40, %c0_41] : memref<256x256xbf16, #tpu.memory_space<vmem>>, vector<256x256xbf16>
      %104 = arith.truncf %102 : vector<16x256xf32> to vector<16x256xbf16>
      %cst_42 = arith.constant dense<0.000000e+00> : vector<16x256xf32>
      %105 = tpu.matmul %104, %103, %cst_42 {dimension_numbers = #tpu.dot_dimension_numbers<[1], [0], [0], [1], [0, 0, 1, 1], [], []>} : vector<16x256xbf16>, vector<256x256xbf16>, vector<16x256xf32> -> vector<16x256xf32>
      %c0_43 = arith.constant 0 : index
      %c0_44 = arith.constant 0 : index
      %106 = vector.load %arg6[%c0_43, %c0_44] : memref<4x128xf32, #tpu.memory_space<vmem>>, vector<4x128xf32>
      %107 = vector.extract_strided_slice %105 {offsets = [0, 0], sizes = [16, 128], strides = [1, 1]} : vector<16x256xf32> to vector<16x128xf32>
      %108 = vector.extract_strided_slice %106 {offsets = [0, 0], sizes = [1, 128], strides = [1, 1]} : vector<4x128xf32> to vector<1x128xf32>
      %109 = vector.extract_strided_slice %106 {offsets = [1, 0], sizes = [1, 128], strides = [1, 1]} : vector<4x128xf32> to vector<1x128xf32>
      %cst_45 = arith.constant dense<0.000000e+00> : vector<16xf32>
      %110 = vector.multi_reduction <add>, %107, %cst_45 [1] : vector<16x128xf32> to vector<16xf32>
      %111 = vector.shape_cast %110 : vector<16xf32> to vector<16x1xf32>
      %cst_46 = arith.constant 3.125000e-02 : f32
      %112 = vector.broadcast %cst_46 : f32 to vector<16x1xf32>
      %113 = arith.mulf %111, %112 : vector<16x1xf32>
      %114 = vector.broadcast %113 : vector<16x1xf32> to vector<16x128xf32>
      %115 = arith.subf %107, %114 : vector<16x128xf32>
      %cst_47 = arith.constant 0.000000e+00 : f32
      %116 = vector.shape_cast %2 : vector<1x128xi1> to vector<1x128xi1>
      %117 = vector.broadcast %116 : vector<1x128xi1> to vector<16x128xi1>
      %118 = vector.broadcast %cst_47 : f32 to vector<16x128xf32>
      %119 = arith.select %117, %115, %118 : vector<16x128xi1>, vector<16x128xf32>
      %120 = arith.mulf %119, %119 : vector<16x128xf32>
      %cst_48 = arith.constant dense<0.000000e+00> : vector<16xf32>
      %121 = vector.multi_reduction <add>, %120, %cst_48 [1] : vector<16x128xf32> to vector<16xf32>
      %122 = vector.shape_cast %121 : vector<16xf32> to vector<16x1xf32>
      %cst_49 = arith.constant 3.125000e-02 : f32
      %123 = vector.broadcast %cst_49 : f32 to vector<16x1xf32>
      %124 = arith.mulf %122, %123 : vector<16x1xf32>
      %125 = vector.broadcast %113 : vector<16x1xf32> to vector<16x128xf32>
      %126 = arith.subf %107, %125 : vector<16x128xf32>
      %cst_50 = arith.constant 9.99999974E-6 : f32
      %127 = vector.broadcast %cst_50 : f32 to vector<16x1xf32>
      %128 = arith.addf %124, %127 : vector<16x1xf32>
      %129 = math.rsqrt %128 : vector<16x1xf32>
      %130 = vector.broadcast %129 : vector<16x1xf32> to vector<16x128xf32>
      %131 = arith.mulf %126, %130 : vector<16x128xf32>
      %132 = vector.broadcast %108 : vector<1x128xf32> to vector<16x128xf32>
      %133 = arith.mulf %131, %132 : vector<16x128xf32>
      %134 = vector.broadcast %109 : vector<1x128xf32> to vector<16x128xf32>
      %135 = arith.addf %133, %134 : vector<16x128xf32>
      %136 = vector.extract_strided_slice %105 {offsets = [0, 128], sizes = [16, 128], strides = [1, 1]} : vector<16x256xf32> to vector<16x128xf32>
      %137 = vector.extract_strided_slice %106 {offsets = [2, 0], sizes = [1, 128], strides = [1, 1]} : vector<4x128xf32> to vector<1x128xf32>
      %138 = vector.extract_strided_slice %106 {offsets = [3, 0], sizes = [1, 128], strides = [1, 1]} : vector<4x128xf32> to vector<1x128xf32>
      %cst_51 = arith.constant dense<0.000000e+00> : vector<16xf32>
      %139 = vector.multi_reduction <add>, %136, %cst_51 [1] : vector<16x128xf32> to vector<16xf32>
      %140 = vector.shape_cast %139 : vector<16xf32> to vector<16x1xf32>
      %cst_52 = arith.constant 3.125000e-02 : f32
      %141 = vector.broadcast %cst_52 : f32 to vector<16x1xf32>
      %142 = arith.mulf %140, %141 : vector<16x1xf32>
      %143 = vector.broadcast %142 : vector<16x1xf32> to vector<16x128xf32>
      %144 = arith.subf %136, %143 : vector<16x128xf32>
      %cst_53 = arith.constant 0.000000e+00 : f32
      %145 = vector.shape_cast %2 : vector<1x128xi1> to vector<1x128xi1>
      %146 = vector.broadcast %145 : vector<1x128xi1> to vector<16x128xi1>
      %147 = vector.broadcast %cst_53 : f32 to vector<16x128xf32>
      %148 = arith.select %146, %144, %147 : vector<16x128xi1>, vector<16x128xf32>
      %149 = arith.mulf %148, %148 : vector<16x128xf32>
      %cst_54 = arith.constant dense<0.000000e+00> : vector<16xf32>
      %150 = vector.multi_reduction <add>, %149, %cst_54 [1] : vector<16x128xf32> to vector<16xf32>
      %151 = vector.shape_cast %150 : vector<16xf32> to vector<16x1xf32>
      %cst_55 = arith.constant 3.125000e-02 : f32
      %152 = vector.broadcast %cst_55 : f32 to vector<16x1xf32>
      %153 = arith.mulf %151, %152 : vector<16x1xf32>
      %154 = vector.broadcast %142 : vector<16x1xf32> to vector<16x128xf32>
      %155 = arith.subf %136, %154 : vector<16x128xf32>
      %cst_56 = arith.constant 9.99999974E-6 : f32
      %156 = vector.broadcast %cst_56 : f32 to vector<16x1xf32>
      %157 = arith.addf %153, %156 : vector<16x1xf32>
      %158 = math.rsqrt %157 : vector<16x1xf32>
      %159 = vector.broadcast %158 : vector<16x1xf32> to vector<16x128xf32>
      %160 = arith.mulf %155, %159 : vector<16x128xf32>
      %161 = vector.broadcast %137 : vector<1x128xf32> to vector<16x128xf32>
      %162 = arith.mulf %160, %161 : vector<16x128xf32>
      %163 = vector.broadcast %138 : vector<1x128xf32> to vector<16x128xf32>
      %164 = arith.addf %162, %163 : vector<16x128xf32>
      %165 = arith.addf %135, %164 : vector<16x128xf32>
      %cst_57 = arith.constant 0.000000e+00 : f32
      %166 = vector.broadcast %cst_57 : f32 to vector<16x128xf32>
      %167 = arith.maximumf %165, %166 : vector<16x128xf32>
      %c0_58 = arith.constant 0 : index
      %c0_59 = arith.constant 0 : index
      %168 = vector.load %arg2[%c0_58, %c0_59] : memref<16x128xf32, #tpu.memory_space<vmem>>, vector<16x128xf32>
      %169 = arith.addf %167, %168 : vector<16x128xf32>
      %c0_60 = arith.constant 0 : index
      %c0_61 = arith.constant 0 : index
      %170 = vector.load %arg8[%c0_60, %c0_61] : memref<2x128xf32, #tpu.memory_space<vmem>>, vector<2x128xf32>
      %c0_62 = arith.constant 0 : index
      %c0_63 = arith.constant 0 : index
      %171 = vector.load %arg7[%c0_62, %c0_63] : memref<128x128xbf16, #tpu.memory_space<vmem>>, vector<128x128xbf16>
      %172 = arith.truncf %169 : vector<16x128xf32> to vector<16x128xbf16>
      %cst_64 = arith.constant dense<0.000000e+00> : vector<16x128xf32>
      %173 = tpu.matmul %172, %171, %cst_64 {dimension_numbers = #tpu.dot_dimension_numbers<[1], [0], [0], [1], [0, 0, 1, 1], [], []>} : vector<16x128xbf16>, vector<128x128xbf16>, vector<16x128xf32> -> vector<16x128xf32>
      %174 = vector.extract_strided_slice %170 {offsets = [0, 0], sizes = [1, 128], strides = [1, 1]} : vector<2x128xf32> to vector<1x128xf32>
      %175 = vector.extract_strided_slice %170 {offsets = [1, 0], sizes = [1, 128], strides = [1, 1]} : vector<2x128xf32> to vector<1x128xf32>
      %cst_65 = arith.constant dense<0.000000e+00> : vector<16xf32>
      %176 = vector.multi_reduction <add>, %173, %cst_65 [1] : vector<16x128xf32> to vector<16xf32>
      %177 = vector.shape_cast %176 : vector<16xf32> to vector<16x1xf32>
      %cst_66 = arith.constant 3.125000e-02 : f32
      %178 = vector.broadcast %cst_66 : f32 to vector<16x1xf32>
      %179 = arith.mulf %177, %178 : vector<16x1xf32>
      %180 = vector.broadcast %179 : vector<16x1xf32> to vector<16x128xf32>
      %181 = arith.subf %173, %180 : vector<16x128xf32>
      %cst_67 = arith.constant 0.000000e+00 : f32
      %182 = vector.shape_cast %2 : vector<1x128xi1> to vector<1x128xi1>
      %183 = vector.broadcast %182 : vector<1x128xi1> to vector<16x128xi1>
      %184 = vector.broadcast %cst_67 : f32 to vector<16x128xf32>
      %185 = arith.select %183, %181, %184 : vector<16x128xi1>, vector<16x128xf32>
      %186 = arith.mulf %185, %185 : vector<16x128xf32>
      %cst_68 = arith.constant dense<0.000000e+00> : vector<16xf32>
      %187 = vector.multi_reduction <add>, %186, %cst_68 [1] : vector<16x128xf32> to vector<16xf32>
      %188 = vector.shape_cast %187 : vector<16xf32> to vector<16x1xf32>
      %cst_69 = arith.constant 3.125000e-02 : f32
      %189 = vector.broadcast %cst_69 : f32 to vector<16x1xf32>
      %190 = arith.mulf %188, %189 : vector<16x1xf32>
      %191 = vector.broadcast %179 : vector<16x1xf32> to vector<16x128xf32>
      %192 = arith.subf %173, %191 : vector<16x128xf32>
      %cst_70 = arith.constant 9.99999974E-6 : f32
      %193 = vector.broadcast %cst_70 : f32 to vector<16x1xf32>
      %194 = arith.addf %190, %193 : vector<16x1xf32>
      %195 = math.rsqrt %194 : vector<16x1xf32>
      %196 = vector.broadcast %195 : vector<16x1xf32> to vector<16x128xf32>
      %197 = arith.mulf %192, %196 : vector<16x128xf32>
      %198 = vector.broadcast %174 : vector<1x128xf32> to vector<16x128xf32>
      %199 = arith.mulf %197, %198 : vector<16x128xf32>
      %200 = vector.broadcast %175 : vector<1x128xf32> to vector<16x128xf32>
      %201 = arith.addf %199, %200 : vector<16x128xf32>
      %cst_71 = arith.constant 0.000000e+00 : f32
      %202 = vector.broadcast %cst_71 : f32 to vector<16x128xf32>
      %203 = arith.maximumf %201, %202 : vector<16x128xf32>
      %c0_72 = arith.constant 0 : index
      %c0_73 = arith.constant 0 : index
      %204 = vector.load %arg14[%c0_72, %c0_73] : memref<16x128xf32, #tpu.memory_space<vmem>>, vector<16x128xf32>
      tpu.vector_store %arg14[%c0_72, %c0_73], %203 {strides = array<i32>} : memref<16x128xf32, #tpu.memory_space<vmem>>, vector<16x128xf32>,
    } else {
    }
    %c0 = arith.constant 0 : index
    %c0_1 = arith.constant 0 : index
    %6 = vector.load %arg14[%c0, %c0_1] : memref<16x128xf32, #tpu.memory_space<vmem>>, vector<16x128xf32>
    %c0_2 = arith.constant 0 : index
    %c0_3 = arith.constant 0 : index
    %c0_4 = arith.constant 0 : index
    %7 = vector.load %arg9[%c0_2, %c0_3, %c0_4] : memref<1x128x896xbf16, #tpu.memory_space<vmem>>, vector<1x128x896xbf16>
    %8 = vector.shape_cast %7 : vector<1x128x896xbf16> to vector<128x896xbf16>
    %9 = arith.truncf %6 : vector<16x128xf32> to vector<16x128xbf16>
    %cst = arith.constant dense<0.000000e+00> : vector<16x896xf32>
    %10 = tpu.matmul %9, %8, %cst {dimension_numbers = #tpu.dot_dimension_numbers<[1], [0], [0], [1], [0, 0, 1, 1], [], []>} : vector<16x128xbf16>, vector<128x896xbf16>, vector<16x896xf32> -> vector<16x896xf32>
    %11 = vector.extract_strided_slice %10 {offsets = [0, 128], sizes = [16, 128], strides = [1, 1]} : vector<16x896xf32> to vector<16x128xf32>
    %12 = vector.extract_strided_slice %10 {offsets = [0, 256], sizes = [16, 128], strides = [1, 1]} : vector<16x896xf32> to vector<16x128xf32>
    %13 = vector.extract_strided_slice %10 {offsets = [0, 384], sizes = [16, 128], strides = [1, 1]} : vector<16x896xf32> to vector<16x128xf32>
    %14 = vector.extract_strided_slice %10 {offsets = [0, 512], sizes = [16, 128], strides = [1, 1]} : vector<16x896xf32> to vector<16x128xf32>
    %15 = vector.extract_strided_slice %10 {offsets = [0, 640], sizes = [16, 128], strides = [1, 1]} : vector<16x896xf32> to vector<16x128xf32>
    %16 = vector.extract_strided_slice %10 {offsets = [0, 768], sizes = [16, 128], strides = [1, 1]} : vector<16x896xf32> to vector<16x128xf32>
    %17 = tpu.concatenate %11, %12, %13, %14, %15, %16 in 0 : vector<16x128xf32>, vector<16x128xf32>, vector<16x128xf32>, vector<16x128xf32>, vector<16x128xf32>, vector<16x128xf32> -> vector<96x128xf32>
    %18 = arith.truncf %17 : vector<96x128xf32> to vector<96x128xbf16>
    %19 = vector.extract_strided_slice %10 {offsets = [0, 0], sizes = [16, 128], strides = [1, 1]} : vector<16x896xf32> to vector<16x128xf32>
    %c0_5 = arith.constant 0 : index
    %c0_6 = arith.constant 0 : index
    %20 = vector.load %arg10[%c0_5, %c0_6] : memref<16x96xbf16, #tpu.memory_space<vmem>>, vector<16x96xbf16>
    %cst_7 = arith.constant dense<0.000000e+00> : vector<16x128xf32>
    %21 = tpu.matmul %20, %18, %cst_7 {dimension_numbers = #tpu.dot_dimension_numbers<[1], [0], [0], [1], [0, 0, 1, 1], [], []>} : vector<16x96xbf16>, vector<96x128xbf16>, vector<16x128xf32> -> vector<16x128xf32>
    %22 = arith.addf %19, %21 : vector<16x128xf32>
    %c0_8 = arith.constant 0 : index
    %c0_9 = arith.constant 0 : index
    %c0_10 = arith.constant 0 : index
    %23 = vector.load %arg12[%c0_8, %c0_9, %c0_10] : memref<1x4x128xf32, #tpu.memory_space<vmem>>, vector<1x4x128xf32>
    %24 = vector.shape_cast %23 : vector<1x4x128xf32> to vector<4x128xf32>
    %25 = vector.extract_strided_slice %24 {offsets = [0, 0], sizes = [1, 128], strides = [1, 1]} : vector<4x128xf32> to vector<1x128xf32>
    %26 = vector.extract_strided_slice %24 {offsets = [1, 0], sizes = [1, 128], strides = [1, 1]} : vector<4x128xf32> to vector<1x128xf32>
    %cst_11 = arith.constant dense<0.000000e+00> : vector<16xf32>
    %27 = vector.multi_reduction <add>, %22, %cst_11 [1] : vector<16x128xf32> to vector<16xf32>
    %28 = vector.shape_cast %27 : vector<16xf32> to vector<16x1xf32>
    %cst_12 = arith.constant 3.125000e-02 : f32
    %29 = vector.broadcast %cst_12 : f32 to vector<16x1xf32>
    %30 = arith.mulf %28, %29 : vector<16x1xf32>
    %31 = vector.broadcast %30 : vector<16x1xf32> to vector<16x128xf32>
    %32 = arith.subf %22, %31 : vector<16x128xf32>
    %cst_13 = arith.constant 0.000000e+00 : f32
    %33 = vector.shape_cast %2 : vector<1x128xi1> to vector<1x128xi1>
    %34 = vector.broadcast %33 : vector<1x128xi1> to vector<16x128xi1>
    %35 = vector.broadcast %cst_13 : f32 to vector<16x128xf32>
    %36 = arith.select %34, %32, %35 : vector<16x128xi1>, vector<16x128xf32>
    %37 = arith.mulf %36, %36 : vector<16x128xf32>
    %cst_14 = arith.constant dense<0.000000e+00> : vector<16xf32>
    %38 = vector.multi_reduction <add>, %37, %cst_14 [1] : vector<16x128xf32> to vector<16xf32>
    %39 = vector.shape_cast %38 : vector<16xf32> to vector<16x1xf32>
    %cst_15 = arith.constant 3.125000e-02 : f32
    %40 = vector.broadcast %cst_15 : f32 to vector<16x1xf32>
    %41 = arith.mulf %39, %40 : vector<16x1xf32>
    %42 = vector.broadcast %30 : vector<16x1xf32> to vector<16x128xf32>
    %43 = arith.subf %22, %42 : vector<16x128xf32>
    %cst_16 = arith.constant 9.99999974E-6 : f32
    %44 = vector.broadcast %cst_16 : f32 to vector<16x1xf32>
    %45 = arith.addf %41, %44 : vector<16x1xf32>
    %46 = math.rsqrt %45 : vector<16x1xf32>
    %47 = vector.broadcast %46 : vector<16x1xf32> to vector<16x128xf32>
    %48 = arith.mulf %43, %47 : vector<16x128xf32>
    %49 = vector.broadcast %25 : vector<1x128xf32> to vector<16x128xf32>
    %50 = arith.mulf %48, %49 : vector<16x128xf32>
    %51 = vector.broadcast %26 : vector<1x128xf32> to vector<16x128xf32>
    %52 = arith.addf %50, %51 : vector<16x128xf32>
    %cst_17 = arith.constant 0.000000e+00 : f32
    %53 = vector.broadcast %cst_17 : f32 to vector<16x128xf32>
    %54 = arith.maximumf %52, %53 : vector<16x128xf32>
    %c0_18 = arith.constant 0 : index
    %c0_19 = arith.constant 0 : index
    %c0_20 = arith.constant 0 : index
    %55 = vector.load %arg11[%c0_18, %c0_19, %c0_20] : memref<1x128x128xbf16, #tpu.memory_space<vmem>>, vector<1x128x128xbf16>
    %56 = vector.shape_cast %55 : vector<1x128x128xbf16> to vector<128x128xbf16>
    %57 = arith.truncf %54 : vector<16x128xf32> to vector<16x128xbf16>
    %cst_21 = arith.constant dense<0.000000e+00> : vector<16x128xf32>
    %58 = tpu.matmul %57, %56, %cst_21 {dimension_numbers = #tpu.dot_dimension_numbers<[1], [0], [0], [1], [0, 0, 1, 1], [], []>} : vector<16x128xbf16>, vector<128x128xbf16>, vector<16x128xf32> -> vector<16x128xf32>
    %59 = vector.extract_strided_slice %24 {offsets = [2, 0], sizes = [1, 128], strides = [1, 1]} : vector<4x128xf32> to vector<1x128xf32>
    %60 = vector.extract_strided_slice %24 {offsets = [3, 0], sizes = [1, 128], strides = [1, 1]} : vector<4x128xf32> to vector<1x128xf32>
    %cst_22 = arith.constant dense<0.000000e+00> : vector<16xf32>
    %61 = vector.multi_reduction <add>, %58, %cst_22 [1] : vector<16x128xf32> to vector<16xf32>
    %62 = vector.shape_cast %61 : vector<16xf32> to vector<16x1xf32>
    %cst_23 = arith.constant 3.125000e-02 : f32
    %63 = vector.broadcast %cst_23 : f32 to vector<16x1xf32>
    %64 = arith.mulf %62, %63 : vector<16x1xf32>
    %65 = vector.broadcast %64 : vector<16x1xf32> to vector<16x128xf32>
    %66 = arith.subf %58, %65 : vector<16x128xf32>
    %cst_24 = arith.constant 0.000000e+00 : f32
    %67 = vector.shape_cast %2 : vector<1x128xi1> to vector<1x128xi1>
    %68 = vector.broadcast %67 : vector<1x128xi1> to vector<16x128xi1>
    %69 = vector.broadcast %cst_24 : f32 to vector<16x128xf32>
    %70 = arith.select %68, %66, %69 : vector<16x128xi1>, vector<16x128xf32>
    %71 = arith.mulf %70, %70 : vector<16x128xf32>
    %cst_25 = arith.constant dense<0.000000e+00> : vector<16xf32>
    %72 = vector.multi_reduction <add>, %71, %cst_25 [1] : vector<16x128xf32> to vector<16xf32>
    %73 = vector.shape_cast %72 : vector<16xf32> to vector<16x1xf32>
    %cst_26 = arith.constant 3.125000e-02 : f32
    %74 = vector.broadcast %cst_26 : f32 to vector<16x1xf32>
    %75 = arith.mulf %73, %74 : vector<16x1xf32>
    %76 = vector.broadcast %64 : vector<16x1xf32> to vector<16x128xf32>
    %77 = arith.subf %58, %76 : vector<16x128xf32>
    %cst_27 = arith.constant 9.99999974E-6 : f32
    %78 = vector.broadcast %cst_27 : f32 to vector<16x1xf32>
    %79 = arith.addf %75, %78 : vector<16x1xf32>
    %80 = math.rsqrt %79 : vector<16x1xf32>
    %81 = vector.broadcast %80 : vector<16x1xf32> to vector<16x128xf32>
    %82 = arith.mulf %77, %81 : vector<16x128xf32>
    %83 = vector.broadcast %59 : vector<1x128xf32> to vector<16x128xf32>
    %84 = arith.mulf %82, %83 : vector<16x128xf32>
    %85 = vector.broadcast %60 : vector<1x128xf32> to vector<16x128xf32>
    %86 = arith.addf %84, %85 : vector<16x128xf32>
    %87 = arith.addf %86, %6 : vector<16x128xf32>
    %cst_28 = arith.constant 0.000000e+00 : f32
    %88 = vector.broadcast %cst_28 : f32 to vector<16x128xf32>
    %89 = arith.maximumf %87, %88 : vector<16x128xf32>
    %c0_29 = arith.constant 0 : index
    %c0_30 = arith.constant 0 : index
    %90 = vector.load %arg14[%c0_29, %c0_30] : memref<16x128xf32, #tpu.memory_space<vmem>>, vector<16x128xf32>
    tpu.vector_store %arg14[%c0_29, %c0_30], %89 {strides = array<i32>} : memref<16x128xf32, #tpu.memory_space<vmem>>, vector<16x128xf32>,
    %c3_i32 = arith.constant 3 : i32
    %91 = arith.cmpi eq, %arg0, %c3_i32 : i32
    %92 = arith.extui %91 : i1 to i32
    %c0_i32_31 = arith.constant 0 : i32
    %93 = arith.cmpi ne, %92, %c0_i32_31 : i32
    scf.if %93 {
      %c0_32 = arith.constant 0 : index
      %c0_33 = arith.constant 0 : index
      %94 = vector.load %arg13[%c0_32, %c0_33] : memref<16x128xf32, #tpu.memory_space<vmem>>, vector<16x128xf32>
      tpu.vector_store %arg13[%c0_32, %c0_33], %89 {strides = array<i32>} : memref<16x128xf32, #tpu.memory_space<vmem>>, vector<16x128xf32>,
    } else {
    }
    return
  }
  func.func @transform_0(%arg0: i32) -> (i32, i32) {
    %c0_i32 = arith.constant 0 : i32
    %c0_i32_0 = arith.constant 0 : i32
    %c0_i32_1 = arith.constant 0 : i32
    return %c0_i32, %c0_i32_0 : i32, i32
  }
  func.func @transform_1(%arg0: i32) -> (i32, i32) {
    %c0_i32 = arith.constant 0 : i32
    %c0_i32_0 = arith.constant 0 : i32
    %c0_i32_1 = arith.constant 0 : i32
    return %c0_i32, %c0_i32_0 : i32, i32
  }
  func.func @transform_2(%arg0: i32) -> (i32, i32) {
    %c0_i32 = arith.constant 0 : i32
    %c0_i32_0 = arith.constant 0 : i32
    %c0_i32_1 = arith.constant 0 : i32
    return %c0_i32, %c0_i32_0 : i32, i32
  }
  func.func @transform_3(%arg0: i32) -> (i32, i32) {
    %c0_i32 = arith.constant 0 : i32
    %c0_i32_0 = arith.constant 0 : i32
    %c0_i32_1 = arith.constant 0 : i32
    return %c0_i32, %c0_i32_0 : i32, i32
  }
  func.func @transform_4(%arg0: i32) -> (i32, i32) {
    %c0_i32 = arith.constant 0 : i32
    %c0_i32_0 = arith.constant 0 : i32
    %c0_i32_1 = arith.constant 0 : i32
    return %c0_i32, %c0_i32_0 : i32, i32
  }
  func.func @transform_5(%arg0: i32) -> (i32, i32) {
    %c0_i32 = arith.constant 0 : i32
    %c0_i32_0 = arith.constant 0 : i32
    %c0_i32_1 = arith.constant 0 : i32
    return %c0_i32, %c0_i32_0 : i32, i32
  }
  func.func @transform_6(%arg0: i32) -> (i32, i32) {
    %c0_i32 = arith.constant 0 : i32
    %c0_i32_0 = arith.constant 0 : i32
    %c0_i32_1 = arith.constant 0 : i32
    return %c0_i32, %c0_i32_0 : i32, i32
  }
  func.func @transform_7(%arg0: i32) -> (i32, i32) {
    %c0_i32 = arith.constant 0 : i32
    %c0_i32_0 = arith.constant 0 : i32
    %c0_i32_1 = arith.constant 0 : i32
    return %c0_i32, %c0_i32_0 : i32, i32
  }
  func.func @transform_8(%arg0: i32) -> (i32, i32, i32) {
    %c0_i32 = arith.constant 0 : i32
    %c0_i32_0 = arith.constant 0 : i32
    %c0_i32_1 = arith.constant 0 : i32
    return %arg0, %c0_i32, %c0_i32_0 : i32, i32, i32
  }
  func.func @transform_9(%arg0: i32) -> (i32, i32) {
    %c0_i32 = arith.constant 0 : i32
    %c0_i32_0 = arith.constant 0 : i32
    %c0_i32_1 = arith.constant 0 : i32
    return %c0_i32, %c0_i32_0 : i32, i32
  }
  func.func @transform_10(%arg0: i32) -> (i32, i32, i32) {
    %c0_i32 = arith.constant 0 : i32
    %c0_i32_0 = arith.constant 0 : i32
    %c0_i32_1 = arith.constant 0 : i32
    return %arg0, %c0_i32, %c0_i32_0 : i32, i32, i32
  }
  func.func @transform_11(%arg0: i32) -> (i32, i32, i32) {
    %c0_i32 = arith.constant 0 : i32
    %c0_i32_0 = arith.constant 0 : i32
    %c0_i32_1 = arith.constant 0 : i32
    return %arg0, %c0_i32, %c0_i32_0 : i32, i32, i32
  }
  func.func @transform_12(%arg0: i32) -> (i32, i32) {
    %c0_i32 = arith.constant 0 : i32
    %c0_i32_0 = arith.constant 0 : i32
    %c0_i32_1 = arith.constant 0 : i32
    return %c0_i32, %c0_i32_0 : i32, i32
  }
}

</mosaic_0001>

<llo_original>
// kernel: tpu_custom_call.1
$region0: #{tpu_custom_call.1}
  #allocation0 [shape = 'u32[]', space=smem, size = 0x4, offset = 0x4, fixed_abs, tag = 'smem constant byte address 0x4 - core index']
  #allocation1 [shape = 'u32[144,128]{1,0:T(1,128)}', space=vmem, size = 0x12000, scoped, tag = 'internal scratch']
  #allocation2 [shape = 'f32[16,128]{1,0:T(8,128)}', space=vmem, size = 0x2000, scoped, tag = 'scratch operand']
  %s0 = inlined_call_operand.vmem [shape: f32[16,4], index: 0, kind: input, shape index: {}]
  %s1 = inlined_call_operand.vmem [shape: f32[16,128], index: 1, kind: input, shape index: {}]
  %s2 = inlined_call_operand.hbm [shape: bf16[4,256], index: 2, kind: input, shape index: {}]
  %s3 = inlined_call_operand.vmem [shape: f32[1,256], index: 3, kind: input, shape index: {}]
  %s4 = inlined_call_operand.hbm [shape: bf16[256,256], index: 4, kind: input, shape index: {}]
  %s5 = inlined_call_operand.hbm [shape: f32[4,128], index: 5, kind: input, shape index: {}]
  %s6 = inlined_call_operand.hbm [shape: bf16[128,128], index: 6, kind: input, shape index: {}]
  %s7 = inlined_call_operand.vmem [shape: f32[2,128], index: 7, kind: input, shape index: {}]
  %s8 = inlined_call_operand.hbm [shape: bf16[4,128,896], index: 8, kind: input, shape index: {}]
  %s9 = inlined_call_operand.vmem [shape: bf16[16,96], index: 9, kind: input, shape index: {}]
  %s10 = inlined_call_operand.hbm [shape: bf16[4,128,128], index: 10, kind: input, shape index: {}]
  %s11 = inlined_call_operand.vmem [shape: f32[4,4,128], index: 11, kind: input, shape index: {}]
  %s12 = inlined_call_operand.hbm [shape: f32[16,128], index: 12, kind: output, shape index: {}]
  %s13 = sld [smem:[#allocation0]]
  $region113: #{tpu_custom_call.1} parent=0
    _
  %s15 = ssub.s32 1, %s13
  %s16 = scalar_select 0, %s15, %s13
  $region1: #{tpu_custom_call.1} parent=0
    #allocation3 [shape = 'u8[2048]{0}', space=vmem, size = 0x800, scoped, tag = 'input window, operand 2, single buffered']
    #allocation4 [shape = 's32[2]{0}', space=sflag, size = 0x8, scoped, tag = 'scoped memory for tpu_custom_call.1']
    #allocation5 [shape = 's32[2]{0}', space=sflag, size = 0x8, scoped, tag = 'scoped memory for tpu_custom_call.1']
    #allocation6 [shape = 'u8[131072]{0}', space=vmem, size = 0x20000, scoped, tag = 'input window, operand 4, single buffered']
    #allocation7 [shape = 's32[1]{0}', space=sflag, size = 0x4, scoped, tag = 'scoped memory for tpu_custom_call.1']
    #allocation8 [shape = 'u8[2048]{0}', space=vmem, size = 0x800, scoped, tag = 'input window, operand 5, single buffered']
    #allocation9 [shape = 'u8[32768]{0}', space=vmem, size = 0x8000, scoped, tag = 'input window, operand 6, single buffered']
    #allocation10 [shape = 's32[1]{0}', space=sflag, size = 0x4, scoped, tag = 'scoped memory for tpu_custom_call.1']
    #allocation11 [shape = 'u8[458752]{0}', space=vmem, size = 0x70000, scoped, tag = 'input window, operand 8']
    #allocation12 [shape = 'u8[65536]{0}', space=vmem, size = 0x10000, scoped, tag = 'input window, operand 10']
    #allocation13 [shape = 'u8[8192]{0}', space=vmem, size = 0x2000, scoped, tag = 'output window, operand 0, single buffered']
    %17 = vsyncpa [#allocation4], 0
    %18 = vsyncpa [#allocation7], 0
    %19 = vsyncpa [#allocation10], 0
    %20 = vsyncpa [#allocation5], 0
    loop: start=0, step=1, limit=6
    $region2: #{tpu_custom_call.1} parent=1 // loop_pre_header
      _
    $region3: #{tpu_custom_call.1} parent=1 // loop_header
      %s22 = sphi 0, %s26
      %p23 = scmp.ge.s32.totalorder %s22, 6
      %s30 = sphi 0, %s30
      %s32 = sphi 0, %s30
      %s33 = sphi 0, %s32
      %s47 = sphi 0, %s33
      %s51 = sphi 0, %s51
      %s53 = sphi 0, %s51
      %s54 = sphi 0, %s53
      %s68 = sphi 0, %s54
      %s72 = sphi 0, %s72
      %s74 = sphi 0, %s72
      %s75 = sphi 0, %s74
      %s89 = sphi 0, %s75
      %s93 = sphi 0, %s93
      %s95 = sphi 0, %s93
      %s96 = sphi 0, %s95
      %s110 = sphi 0, %s96
      %s114 = sphi 0, %s114
      %s116 = sphi 0, %s114
      %s117 = sphi 0, %s116
      %s131 = sphi 0, %s117
      %s135 = sphi 0, %s135
      %s137 = sphi 0, %s135
      %s138 = sphi 0, %s137
      %s152 = sphi 0, %s138
      %s156 = sphi 0, %s156
      %s158 = sphi 0, %s156
      %s159 = sphi 0, %s158
      %s173 = sphi 0, %s159
      %s177 = sphi 0, %s177
      %s179 = sphi 0, %s177
      %s180 = sphi 0, %s179
      %s194 = sphi 0, %s180
      %s200 = sphi 0, %s202
      %s203 = sphi 0, %s200
      %s204 = sphi 0, %s203
      %s220 = sphi 0, %s204
      %s224 = sphi 0, %s224
      %s226 = sphi 0, %s224
      %s227 = sphi 0, %s226
      %s241 = sphi 0, %s227
      %s247 = sphi 0, %s249
      %s250 = sphi 0, %s247
      %s251 = sphi 0, %s250
      %s267 = sphi 0, %s251
      %s273 = sphi 0, %s275
      %s276 = sphi 0, %s273
      %s277 = sphi 0, %s276
      %s293 = sphi 0, %s277
      %s297 = sphi 0, %s297
      %s299 = sphi 0, %s297
      %s300 = sphi 0, %s299
      %s314 = sphi 0, %s300
    $region4: #{tpu_custom_call.1} parent=1 // loop_header_branch
      %25 = sbr.rel (%p23) target = $region8
    $region5: #{tpu_custom_call.1} parent=1 // loop_body
      %s27 = ssub.s32 %s22, 1
      %s28 = ssub.s32 %s22, 2
      %s29 = sadd.s32 %s22, 1
      %s31 = sadd.s32 %s30, 1
      %p34 = scmp.eq.s32.totalorder %s22, 3
      %p35 = scmp.ne.s32.totalorder %s30, %s32
      %p36 = scmp.eq.s32.totalorder %s22, 0
      %p37 = por %p35, %p36
      %p38 = scmp.ne.s32.totalorder %s30, %s32
      %p39 = scmp.eq.s32.totalorder %s27, 3
      %p40 = por %p38, %p39
      %p41 = scmp.ne.s32.totalorder %s32, %s33
      %p42 = scmp.eq.s32.totalorder %s27, 0
      %p43 = por %p41, %p42
      %p44 = scmp.ne.s32.totalorder %s32, %s33
      %p45 = scmp.eq.s32.totalorder %s28, 3
      %p46 = por %p44, %p45
      %p48 = scmp.ne.s32.totalorder %s33, %s47
      %p49 = scmp.eq.s32.totalorder %s28, 0
      %p50 = por %p48, %p49
      %s52 = sadd.s32 %s51, 1
      %p55 = scmp.eq.s32.totalorder %s22, 3
      %p56 = scmp.ne.s32.totalorder %s51, %s53
      %p57 = scmp.eq.s32.totalorder %s22, 0
      %p58 = por %p56, %p57
      %p59 = scmp.ne.s32.totalorder %s51, %s53
      %p60 = scmp.eq.s32.totalorder %s27, 3
      %p61 = por %p59, %p60
      %p62 = scmp.ne.s32.totalorder %s53, %s54
      %p63 = scmp.eq.s32.totalorder %s27, 0
      %p64 = por %p62, %p63
      %p65 = scmp.ne.s32.totalorder %s53, %s54
      %p66 = scmp.eq.s32.totalorder %s28, 3
      %p67 = por %p65, %p66
      %p69 = scmp.ne.s32.totalorder %s54, %s68
      %p70 = scmp.eq.s32.totalorder %s28, 0
      %p71 = por %p69, %p70
      %s73 = sadd.s32 %s72, 1
      %p76 = scmp.eq.s32.totalorder %s22, 3
      %p77 = scmp.ne.s32.totalorder %s72, %s74
      %p78 = scmp.eq.s32.totalorder %s22, 0
      %p79 = por %p77, %p78
      %p80 = scmp.ne.s32.totalorder %s72, %s74
      %p81 = scmp.eq.s32.totalorder %s27, 3
      %p82 = por %p80, %p81
      %p83 = scmp.ne.s32.totalorder %s74, %s75
      %p84 = scmp.eq.s32.totalorder %s27, 0
      %p85 = por %p83, %p84
      %p86 = scmp.ne.s32.totalorder %s74, %s75
      %p87 = scmp.eq.s32.totalorder %s28, 3
      %p88 = por %p86, %p87
      %p90 = scmp.ne.s32.totalorder %s75, %s89
      %p91 = scmp.eq.s32.totalorder %s28, 0
      %p92 = por %p90, %p91
      %s94 = sadd.s32 %s93, 1
      %p97 = scmp.eq.s32.totalorder %s22, 3
      %p98 = scmp.ne.s32.totalorder %s93, %s95
      %p99 = scmp.eq.s32.totalorder %s22, 0
      %p100 = por %p98, %p99
      %p101 = scmp.ne.s32.totalorder %s93, %s95
      %p102 = scmp.eq.s32.totalorder %s27, 3
      %p103 = por %p101, %p102
      %p104 = scmp.ne.s32.totalorder %s95, %s96
      %p105 = scmp.eq.s32.totalorder %s27, 0
      %p106 = por %p104, %p105
      %p107 = scmp.ne.s32.totalorder %s95, %s96
      %p108 = scmp.eq.s32.totalorder %s28, 3
      %p109 = por %p107, %p108
      %p111 = scmp.ne.s32.totalorder %s96, %s110
      %p112 = scmp.eq.s32.totalorder %s28, 0
      %p113 = por %p111, %p112
      %s115 = sadd.s32 %s114, 1
      %p118 = scmp.eq.s32.totalorder %s22, 3
      %p119 = scmp.ne.s32.totalorder %s114, %s116
      %p120 = scmp.eq.s32.totalorder %s22, 0
      %p121 = por %p119, %p120
      %p122 = scmp.ne.s32.totalorder %s114, %s116
      %p123 = scmp.eq.s32.totalorder %s27, 3
      %p124 = por %p122, %p123
      %p125 = scmp.ne.s32.totalorder %s116, %s117
      %p126 = scmp.eq.s32.totalorder %s27, 0
      %p127 = por %p125, %p126
      %p128 = scmp.ne.s32.totalorder %s116, %s117
      %p129 = scmp.eq.s32.totalorder %s28, 3
      %p130 = por %p128, %p129
      %p132 = scmp.ne.s32.totalorder %s117, %s131
      %p133 = scmp.eq.s32.totalorder %s28, 0
      %p134 = por %p132, %p133
      %s136 = sadd.s32 %s135, 1
      %p139 = scmp.eq.s32.totalorder %s22, 3
      %p140 = scmp.ne.s32.totalorder %s135, %s137
      %p141 = scmp.eq.s32.totalorder %s22, 0
      %p142 = por %p140, %p141
      %p143 = scmp.ne.s32.totalorder %s135, %s137
      %p144 = scmp.eq.s32.totalorder %s27, 3
      %p145 = por %p143, %p144
      %p146 = scmp.ne.s32.totalorder %s137, %s138
      %p147 = scmp.eq.s32.totalorder %s27, 0
      %p148 = por %p146, %p147
      %p149 = scmp.ne.s32.totalorder %s137, %s138
      %p150 = scmp.eq.s32.totalorder %s28, 3
      %p151 = por %p149, %p150
      %p153 = scmp.ne.s32.totalorder %s138, %s152
      %p154 = scmp.eq.s32.totalorder %s28, 0
      %p155 = por %p153, %p154
      %s157 = sadd.s32 %s156, 1
      %p160 = scmp.eq.s32.totalorder %s22, 3
      %p161 = scmp.ne.s32.totalorder %s156, %s158
      %p162 = scmp.eq.s32.totalorder %s22, 0
      %p163 = por %p161, %p162
      %p164 = scmp.ne.s32.totalorder %s156, %s158
      %p165 = scmp.eq.s32.totalorder %s27, 3
      %p166 = por %p164, %p165
      %p167 = scmp.ne.s32.totalorder %s158, %s159
      %p168 = scmp.eq.s32.totalorder %s27, 0
      %p169 = por %p167, %p168
      %p170 = scmp.ne.s32.totalorder %s158, %s159
      %p171 = scmp.eq.s32.totalorder %s28, 3
      %p172 = por %p170, %p171
      %p174 = scmp.ne.s32.totalorder %s159, %s173
      %p175 = scmp.eq.s32.totalorder %s28, 0
      %p176 = por %p174, %p175
      %s178 = sadd.s32 %s177, 1
      %p181 = scmp.eq.s32.totalorder %s22, 3
      %p182 = scmp.ne.s32.totalorder %s177, %s179
      %p183 = scmp.eq.s32.totalorder %s22, 0
      %p184 = por %p182, %p183
      %p185 = scmp.ne.s32.totalorder %s177, %s179
      %p186 = scmp.eq.s32.totalorder %s27, 3
      %p187 = por %p185, %p186
      %p188 = scmp.ne.s32.totalorder %s179, %s180
      %p189 = scmp.eq.s32.totalorder %s27, 0
      %p190 = por %p188, %p189
      %p191 = scmp.ne.s32.totalorder %s179, %s180
      %p192 = scmp.eq.s32.totalorder %s28, 3
      %p193 = por %p191, %p192
      %p195 = scmp.ne.s32.totalorder %s180, %s194
      %p196 = scmp.eq.s32.totalorder %s28, 0
      %p197 = por %p195, %p196
      %s198 = ssub.s32 %s22, %s29
      %p199 = scmp.eq.s32.totalorder %s198, 0
      %s201 = sadd.s32 %s200, 1
      %s202 = scalar_select %p199, %s200, %s201
      %p205 = pneg %p199
      %p206 = scmp.eq.s32.totalorder %s22, 3
      %p207 = por %p205, %p206
      %p208 = scmp.ne.s32.totalorder %s200, %s203
      %p209 = scmp.eq.s32.totalorder %s22, 0
      %p210 = por %p208, %p209
      %p211 = scmp.ne.s32.totalorder %s200, %s203
      %p212 = scmp.eq.s32.totalorder %s27, 3
      %p213 = por %p211, %p212
      %p214 = scmp.ne.s32.totalorder %s203, %s204
      %p215 = scmp.eq.s32.totalorder %s27, 0
      %p216 = por %p214, %p215
      %p217 = scmp.ne.s32.totalorder %s203, %s204
      %p218 = scmp.eq.s32.totalorder %s28, 3
      %p219 = por %p217, %p218
      %p221 = scmp.ne.s32.totalorder %s204, %s220
      %p222 = scmp.eq.s32.totalorder %s28, 0
      %p223 = por %p221, %p222
      %s225 = sadd.s32 %s224, 1
      %p228 = scmp.eq.s32.totalorder %s22, 3
      %p229 = scmp.ne.s32.totalorder %s224, %s226
      %p230 = scmp.eq.s32.totalorder %s22, 0
      %p231 = por %p229, %p230
      %p232 = scmp.ne.s32.totalorder %s224, %s226
      %p233 = scmp.eq.s32.totalorder %s27, 3
      %p234 = por %p232, %p233
      %p235 = scmp.ne.s32.totalorder %s226, %s227
      %p236 = scmp.eq.s32.totalorder %s27, 0
      %p237 = por %p235, %p236
      %p238 = scmp.ne.s32.totalorder %s226, %s227
      %p239 = scmp.eq.s32.totalorder %s28, 3
      %p240 = por %p238, %p239
      %p242 = scmp.ne.s32.totalorder %s227, %s241
      %p243 = scmp.eq.s32.totalorder %s28, 0
      %p244 = por %p242, %p243
      %s245 = ssub.s32 %s22, %s29
      %p246 = scmp.eq.s32.totalorder %s245, 0
      %s248 = sadd.s32 %s247, 1
      %s249 = scalar_select %p246, %s247, %s248
      %p252 = pneg %p246
      %p253 = scmp.eq.s32.totalorder %s22, 3
      %p254 = por %p252, %p253
      %p255 = scmp.ne.s32.totalorder %s247, %s250
      %p256 = scmp.eq.s32.totalorder %s22, 0
      %p257 = por %p255, %p256
      %p258 = scmp.ne.s32.totalorder %s247, %s250
      %p259 = scmp.eq.s32.totalorder %s27, 3
      %p260 = por %p258, %p259
      %p261 = scmp.ne.s32.totalorder %s250, %s251
      %p262 = scmp.eq.s32.totalorder %s27, 0
      %p263 = por %p261, %p262
      %p264 = scmp.ne.s32.totalorder %s250, %s251
      %p265 = scmp.eq.s32.totalorder %s28, 3
      %p266 = por %p264, %p265
      %p268 = scmp.ne.s32.totalorder %s251, %s267
      %p269 = scmp.eq.s32.totalorder %s28, 0
      %p270 = por %p268, %p269
      %s271 = ssub.s32 %s22, %s29
      %p272 = scmp.eq.s32.totalorder %s271, 0
      %s274 = sadd.s32 %s273, 1
      %s275 = scalar_select %p272, %s273, %s274
      %p278 = pneg %p272
      %p279 = scmp.eq.s32.totalorder %s22, 3
      %p280 = por %p278, %p279
      %p281 = scmp.ne.s32.totalorder %s273, %s276
      %p282 = scmp.eq.s32.totalorder %s22, 0
      %p283 = por %p281, %p282
      %p284 = scmp.ne.s32.totalorder %s273, %s276
      %p285 = scmp.eq.s32.totalorder %s27, 3
      %p286 = por %p284, %p285
      %p287 = scmp.ne.s32.totalorder %s276, %s277
      %p288 = scmp.eq.s32.totalorder %s27, 0
      %p289 = por %p287, %p288
      %p290 = scmp.ne.s32.totalorder %s276, %s277
      %p291 = scmp.eq.s32.totalorder %s28, 3
      %p292 = por %p290, %p291
      %p294 = scmp.ne.s32.totalorder %s277, %s293
      %p295 = scmp.eq.s32.totalorder %s28, 0
      %p296 = por %p294, %p295
      %s298 = sadd.s32 %s297, 1
      %p301 = scmp.eq.s32.totalorder %s22, 3
      %p302 = scmp.ne.s32.totalorder %s297, %s299
      %p303 = scmp.eq.s32.totalorder %s22, 0
      %p304 = por %p302, %p303
      %p305 = scmp.ne.s32.totalorder %s297, %s299
      %p306 = scmp.eq.s32.totalorder %s27, 3
      %p307 = por %p305, %p306
      %p308 = scmp.ne.s32.totalorder %s299, %s300
      %p309 = scmp.eq.s32.totalorder %s27, 0
      %p310 = por %p308, %p309
      %p311 = scmp.ne.s32.totalorder %s299, %s300
      %p312 = scmp.eq.s32.totalorder %s28, 3
      %p313 = por %p311, %p312
      %p315 = scmp.ne.s32.totalorder %s300, %s314
      %p316 = scmp.eq.s32.totalorder %s28, 0
      %p317 = por %p315, %p316
      %p318 = scmp.le.s32.totalorder 1, %s22
      %p319 = scmp.lt.s32.totalorder %s22, 5
      %p320 = pnand %p318, %p319
      %p321 = pneg %p320
      // Predicated region
      $region9: #{tpu_custom_call.1} parent=5 // pred_check
        _
      $region10: #{tpu_custom_call.1} parent=5 // pred_check_branch
        %323 = sbr.rel (%p320) target = $region12
      $region11: #{tpu_custom_call.1} parent=5 // pred_region
        %s324 = ssub.s32 %s22, 1
        // Predicated region
        $region13: #{tpu_custom_call.1} parent=11 // pred_check
          %p325 = pneg %p43
        $region14: #{tpu_custom_call.1} parent=11 // pred_check_branch
          %327 = sbr.rel (%p325) target = $region16
        $region15: #{tpu_custom_call.1} parent=11 // pred_region
          _
        $region16: #{tpu_custom_call.1} parent=11 // pred_fallthru
          _
        // Predicated region
        $region17: #{tpu_custom_call.1} parent=11 // pred_check
          %p328 = pneg %p64
        $region18: #{tpu_custom_call.1} parent=11 // pred_check_branch
          %330 = sbr.rel (%p328) target = $region20
        $region19: #{tpu_custom_call.1} parent=11 // pred_region
          _
        $region20: #{tpu_custom_call.1} parent=11 // pred_fallthru
          _
        // Predicated region
        $region21: #{tpu_custom_call.1} parent=11 // pred_check
          %p331 = pneg %p85
        $region22: #{tpu_custom_call.1} parent=11 // pred_check_branch
          %333 = sbr.rel (%p331) target = $region24
        $region23: #{tpu_custom_call.1} parent=11 // pred_region
          %s335 = ssub.s32 64, 64
          %336 = vsyncadd [#allocation4], %s335
          %s338 = sshll.u32 [#allocation3], 4
          %s339 = int_to_ptr.vmem [resolvable:$true] %s338
          %341 = dma.hbm_to_vmem [thread:$0]  %s2, 64, %s339, [#allocation4]
        $region24: #{tpu_custom_call.1} parent=11 // pred_fallthru
          _
        // Predicated region
        $region25: #{tpu_custom_call.1} parent=11 // pred_check
          %p342 = pneg %p106
        $region26: #{tpu_custom_call.1} parent=11 // pred_check_branch
          %344 = sbr.rel (%p342) target = $region28
        $region27: #{tpu_custom_call.1} parent=11 // pred_region
          _
        $region28: #{tpu_custom_call.1} parent=11 // pred_fallthru
          _
        // Predicated region
        $region29: #{tpu_custom_call.1} parent=11 // pred_check
          %p345 = pneg %p127
        $region30: #{tpu_custom_call.1} parent=11 // pred_check_branch
          %347 = sbr.rel (%p345) target = $region32
        $region31: #{tpu_custom_call.1} parent=11 // pred_region
          %s349 = ssub.s32 4096, 4096
          %350 = vsyncadd [#allocation7], %s349
          %s351 = sshll.u32 [#allocation6], 4
          %s352 = int_to_ptr.vmem [resolvable:$true] %s351
          %357 = dma.hbm_to_vmem [thread:$0]  %s4, 4096, %s352, [#allocation7], 128, 128, 8
        $region32: #{tpu_custom_call.1} parent=11 // pred_fallthru
          _
        // Predicated region
        $region33: #{tpu_custom_call.1} parent=11 // pred_check
          %p358 = pneg %p148
        $region34: #{tpu_custom_call.1} parent=11 // pred_check_branch
          %360 = sbr.rel (%p358) target = $region36
        $region35: #{tpu_custom_call.1} parent=11 // pred_region
          %s362 = ssub.s32 64, 64
          %363 = vsyncadd [#allocation7], %s362
          %s365 = sshll.u32 [#allocation8], 4
          %s366 = int_to_ptr.vmem [resolvable:$true] %s365
          %368 = dma.hbm_to_vmem [thread:$0]  %s5, 64, %s366, [#allocation7]
        $region36: #{tpu_custom_call.1} parent=11 // pred_fallthru
          _
        // Predicated region
        $region37: #{tpu_custom_call.1} parent=11 // pred_check
          %p369 = pneg %p169
        $region38: #{tpu_custom_call.1} parent=11 // pred_check_branch
          %371 = sbr.rel (%p369) target = $region40
        $region39: #{tpu_custom_call.1} parent=11 // pred_region
          %s373 = ssub.s32 1024, 1024
          %374 = vsyncadd [#allocation10], %s373
          %s375 = sshll.u32 [#allocation9], 4
          %s376 = int_to_ptr.vmem [resolvable:$true] %s375
          %381 = dma.hbm_to_vmem [thread:$0]  %s6, 1024, %s376, [#allocation10], 64, 64, 4
        $region40: #{tpu_custom_call.1} parent=11 // pred_fallthru
          _
        // Predicated region
        $region41: #{tpu_custom_call.1} parent=11 // pred_check
          %p382 = pneg %p190
        $region42: #{tpu_custom_call.1} parent=11 // pred_check_branch
          %384 = sbr.rel (%p382) target = $region44
        $region43: #{tpu_custom_call.1} parent=11 // pred_region
          _
        $region44: #{tpu_custom_call.1} parent=11 // pred_fallthru
          _
        // Predicated region
        $region45: #{tpu_custom_call.1} parent=11 // pred_check
          %p385 = pneg %p237
        $region46: #{tpu_custom_call.1} parent=11 // pred_check_branch
          %387 = sbr.rel (%p385) target = $region48
        $region47: #{tpu_custom_call.1} parent=11 // pred_region
          _
        $region48: #{tpu_custom_call.1} parent=11 // pred_fallthru
          _
      $region12: #{tpu_custom_call.1} parent=5 // pred_fallthru
        _
      %p388 = scmp.lt.s32.totalorder %s22, 4
      // Predicated region
      $region49: #{tpu_custom_call.1} parent=5 // pred_check
        %p389 = pneg %p388
      $region50: #{tpu_custom_call.1} parent=5 // pred_check_branch
        %391 = sbr.rel (%p389) target = $region52
      $region51: #{tpu_custom_call.1} parent=5 // pred_region
        // Predicated region
        $region53: #{tpu_custom_call.1} parent=51 // pred_check
          %p392 = pneg %p210
        $region54: #{tpu_custom_call.1} parent=51 // pred_check_branch
          %394 = sbr.rel (%p392) target = $region56
        $region55: #{tpu_custom_call.1} parent=51 // pred_region
          %s395 = sand.u32 %s22, 1
          %s396 = scalar_lea.sflag [#allocation4], %s395
          %s397 = sand.u32 %s200, 1
          %s398 = smul.addr %s397, 448
          %s399 = scalar_lea.vmem [#allocation11], %s398
          %s401 = ssub.s32 7168, 7168
          %402 = vsyncadd %s396, %s401
          %s403 = smul.addr %s22, 112
          %s404 = smul.addr %s403, 64
          %s405 = scalar_lea.hbm %s8, %s404
          %s406 = sshll.u32 %s399, 4
          %s407 = int_to_ptr.vmem [resolvable:$true] %s406
          %412 = dma.hbm_to_vmem [thread:$0]  %s405, 7168, %s407, %s396, 448, 448, 28
        $region56: #{tpu_custom_call.1} parent=51 // pred_fallthru
          _
        // Predicated region
        $region57: #{tpu_custom_call.1} parent=51 // pred_check
          %p413 = pneg %p257
        $region58: #{tpu_custom_call.1} parent=51 // pred_check_branch
          %415 = sbr.rel (%p413) target = $region60
        $region59: #{tpu_custom_call.1} parent=51 // pred_region
          %s416 = sand.u32 %s22, 1
          %s417 = scalar_lea.sflag [#allocation4], %s416
          %s418 = sand.u32 %s247, 1
          %s419 = smul.addr %s418, 64
          %s420 = scalar_lea.vmem [#allocation12], %s419
          %s422 = ssub.s32 1024, 1024
          %423 = vsyncadd %s417, %s422
          %s424 = smul.addr %s22, 16
          %s425 = smul.addr %s424, 64
          %s426 = scalar_lea.hbm %s10, %s425
          %s427 = sshll.u32 %s420, 4
          %s428 = int_to_ptr.vmem [resolvable:$true] %s427
          %433 = dma.hbm_to_vmem [thread:$0]  %s426, 1024, %s428, %s417, 64, 64, 4
        $region60: #{tpu_custom_call.1} parent=51 // pred_fallthru
          _
        // Predicated region
        $region61: #{tpu_custom_call.1} parent=51 // pred_check
          %p434 = pneg %p283
        $region62: #{tpu_custom_call.1} parent=51 // pred_check_branch
          %436 = sbr.rel (%p434) target = $region64
        $region63: #{tpu_custom_call.1} parent=51 // pred_region
          %p437 = scmp.lt.s32.totalorder %s22, 3
          %s438 = scalar_select %p437, %s22, 3
          %s439 = smul.addr %s438, 4
          %s440 = scalar_lea.vmem %s11, %s439
        $region64: #{tpu_custom_call.1} parent=51 // pred_fallthru
          _
      $region52: #{tpu_custom_call.1} parent=5 // pred_fallthru
        _
      %p441 = scmp.le.s32.totalorder 1, %s22
      %p442 = scmp.lt.s32.totalorder %s22, 5
      %p443 = pnand %p441, %p442
      %p444 = pneg %p443
      // Predicated region
      $region65: #{tpu_custom_call.1} parent=5 // pred_check
        _
      $region66: #{tpu_custom_call.1} parent=5 // pred_check_branch
        %446 = sbr.rel (%p443) target = $region68
      $region67: #{tpu_custom_call.1} parent=5 // pred_region
        %s447 = ssub.s32 %s22, 1
        // Predicated region
        $region69: #{tpu_custom_call.1} parent=67 // pred_check
          %p448 = pneg %p85
        $region70: #{tpu_custom_call.1} parent=67 // pred_check_branch
          %450 = sbr.rel (%p448) target = $region72
        $region71: #{tpu_custom_call.1} parent=67 // pred_region
          %451 = dma.done [#allocation4], 64
        $region72: #{tpu_custom_call.1} parent=67 // pred_fallthru
          _
        // Predicated region
        $region73: #{tpu_custom_call.1} parent=67 // pred_check
          %p452 = pneg %p127
        $region74: #{tpu_custom_call.1} parent=67 // pred_check_branch
          %454 = sbr.rel (%p452) target = $region76
        $region75: #{tpu_custom_call.1} parent=67 // pred_region
          %455 = dma.done [#allocation7], 4096
        $region76: #{tpu_custom_call.1} parent=67 // pred_fallthru
          _
        // Predicated region
        $region77: #{tpu_custom_call.1} parent=67 // pred_check
          %p456 = pneg %p148
        $region78: #{tpu_custom_call.1} parent=67 // pred_check_branch
          %458 = sbr.rel (%p456) target = $region80
        $region79: #{tpu_custom_call.1} parent=67 // pred_region
          %459 = dma.done [#allocation7], 64
        $region80: #{tpu_custom_call.1} parent=67 // pred_fallthru
          _
        // Predicated region
        $region81: #{tpu_custom_call.1} parent=67 // pred_check
          %p460 = pneg %p169
        $region82: #{tpu_custom_call.1} parent=67 // pred_check_branch
          %462 = sbr.rel (%p460) target = $region84
        $region83: #{tpu_custom_call.1} parent=67 // pred_region
          %463 = dma.done [#allocation10], 1024
        $region84: #{tpu_custom_call.1} parent=67 // pred_fallthru
          _
        %s464 = sand.u32 %s27, 1
        %s465 = scalar_lea.sflag [#allocation4], %s464
        %s466 = sand.u32 %s203, 1
        %s467 = smul.addr %s466, 448
        %s468 = scalar_lea.vmem [#allocation11], %s467
        // Predicated region
        $region85: #{tpu_custom_call.1} parent=67 // pred_check
          %p469 = pneg %p216
        $region86: #{tpu_custom_call.1} parent=67 // pred_check_branch
          %471 = sbr.rel (%p469) target = $region88
        $region87: #{tpu_custom_call.1} parent=67 // pred_region
          %472 = dma.done %s465, 7168
        $region88: #{tpu_custom_call.1} parent=67 // pred_fallthru
          _
        %s473 = sand.u32 %s27, 1
        %s474 = scalar_lea.sflag [#allocation4], %s473
        %s475 = sand.u32 %s250, 1
        %s476 = smul.addr %s475, 64
        %s477 = scalar_lea.vmem [#allocation12], %s476
        // Predicated region
        $region89: #{tpu_custom_call.1} parent=67 // pred_check
          %p478 = pneg %p263
        $region90: #{tpu_custom_call.1} parent=67 // pred_check_branch
          %480 = sbr.rel (%p478) target = $region92
        $region91: #{tpu_custom_call.1} parent=67 // pred_region
          %481 = dma.done %s474, 1024
        $region92: #{tpu_custom_call.1} parent=67 // pred_fallthru
          _
        %p482 = pneg %p43
        %p483 = pneg %p40
        %p484 = pneg %p64
        %p485 = pneg %p61
        %p486 = pneg %p85
        %p487 = pneg %p82
        %p488 = pneg %p106
        %p489 = pneg %p103
        %p490 = pneg %p127
        %p491 = pneg %p124
        %p492 = pneg %p148
        %p493 = pneg %p145
        %p494 = pneg %p169
        %p495 = pneg %p166
        %p496 = pneg %p190
        %p497 = pneg %p187
        %s498 = sand.u32 %s27, 1
        %s499 = scalar_lea.sflag [#allocation4], %s498
        %s500 = sand.u32 %s203, 1
        %s501 = smul.addr %s500, 448
        %s502 = scalar_lea.vmem [#allocation11], %s501
        %p503 = pneg %p216
        %p504 = pneg %p213
        %p505 = pneg %p237
        %p506 = pneg %p234
        %s507 = sand.u32 %s27, 1
        %s508 = scalar_lea.sflag [#allocation4], %s507
        %s509 = sand.u32 %s250, 1
        %s510 = smul.addr %s509, 64
        %s511 = scalar_lea.vmem [#allocation12], %s510
        %p512 = pneg %p263
        %p513 = pneg %p260
        %p514 = scmp.lt.s32.totalorder %s27, 3
        %s515 = scalar_select %p514, %s27, 3
        %s516 = smul.addr %s515, 4
        %s517 = scalar_lea.vmem %s11, %s516
        %p518 = pneg %p289
        %p519 = pneg %p286
        %p520 = pneg %p310
        %p521 = pneg %p307
        %p522 = scmp.lt.s32.totalorder %s27, 3
        %s523 = scalar_select %p522, %s27, 3
        %s524 = smul.addr %s523, 4
        %s525 = scalar_lea.vmem %s11, %s524
        %v527 = vlaneseq
        %v528 = vand.u32 %v527, 127
        %vm529 = vcmp.lt.s32.totalorder %v528, 32
        %p530 = scmp.eq.s32.totalorder %s27, 0
        // Predicated region
        $region93: #{tpu_custom_call.1} parent=67 // pred_check
          %p531 = pneg %p530
        $region94: #{tpu_custom_call.1} parent=67 // pred_check_branch
          %533 = sbr.rel (%p531) target = $region96
        $region95: #{tpu_custom_call.1} parent=67 // pred_region
          %v534 = vld [vmem:[%s0] sm:$0xff]
          %v535 = vld [vmem:[%s0 + $0x8] sm:$0xff]
          %v536 = vld [vmem:[#allocation3] sm:$0xf]
          %v537 = vpack.c.bf16 %v535, %v534
          %v538 = vld [vmem:[%s3] sm:$0x3]
          %v540 = vlaneseq
          %v541 = vshrl.u32 %v540, 7
          %v542 = vsub.s32 0, %v541
          %v543 = vrot.slane %v538, %v542
          %v544 = vlaneseq
          %v545 = vshrl.u32 %v544, 7
          %v546 = vsub.s32 1, %v545
          %v547 = vrot.slane %v538, %v546
          %v552 = vunpack.c.l.s4 1983009808
          %v553 = vunpack.c.0.s8 %v552
          %v554 = vlaneseq
          %v555 = vshrl.u32 %v554, 7
          %v556 = vsub.s32 %v553, %v555
          %v557 = vrot.slane %v536, %v556
          %v558 = vcombine.high %v557, %v557
          %vm559 = vcmask 31744
          %v561 = vsel %vm559, %v537, 0
          %vm563 = vcmask 1041408
          %v565 = vsel %vm563, %v557, 0
          %v568 = vsel %vm563, %v558, 0
          %570 = vmatprep.subr.bf16.mxu0 %v568
          %571 = vmatpush1.bf16.msra.mxu0 %v565
          %572 = vmatprep.subr.bf16.mxu0 0
          %573 = vmatpush1.bf16.msra.mxu0 0
          %574 = vmatprep.subr.bf16.mxu0 0
          %575 = vmatpush1.bf16.msra.mxu0 0
          %576 = vmatprep.subr.bf16.mxu0 0
          %577 = vmatpush1.bf16.msra.mxu0 0
          %578 = vmatprep.subr.bf16.mxu0 0
          %579 = vmatpush1.bf16.msra.mxu0 0
          %580 = vmatprep.subr.bf16.mxu0 0
          %581 = vmatpush1.bf16.msra.mxu0 0
          %582 = vmatprep.subr.bf16.mxu0 0
          %583 = vmatpush1.bf16.msra.mxu0 0
          %584 = vmatprep.subr.bf16.mxu0 0
          %585 = vmatpush1.bf16.msra.mxu0 0
          %586 = vmatprep.subr.bf16.mxu0 0
          %587 = vmatpush1.bf16.msra.mxu0 0
          %588 = vmatprep.subr.bf16.mxu0 0
          %589 = vmatpush1.bf16.msra.mxu0 0
          %590 = vmatprep.subr.bf16.mxu0 0
          %591 = vmatpush1.bf16.msra.mxu0 0
          %592 = vmatprep.subr.bf16.mxu0 0
          %593 = vmatpush1.bf16.msra.mxu0 0
          %594 = vmatprep.subr.bf16.mxu0 0
          %595 = vmatpush1.bf16.msra.mxu0 0
          %596 = vmatprep.subr.bf16.mxu0 0
          %597 = vmatpush1.bf16.msra.mxu0 0
          %598 = vmatprep.subr.bf16.mxu0 0
          %599 = vmatpush1.bf16.msra.mxu0 0
          %600 = vmatprep.subr.bf16.mxu0 0
          %601 = vmatpush1.bf16.msra.mxu0 0
          %602 = vmatprep.mubr.bf16.mxu0 0
          %603 = vmatmul.mubr.bf16.gmra.mrb[0].mxu0 %v561
          %v604 = vpop.f32.mrb[0].mxu0
          %v605 = vadd.f32 %v543, %v604
          %v606 = vpop.f32.mrb[0].mxu0
          %v607 = vadd.f32 %v547, %v606
          %v608 = vpop.f32.mrb[0].mxu0
          %v609 = vadd.f32 %v543, %v608
          %v610 = vpop.f32.mrb[0].mxu0
          %v611 = vadd.f32 %v547, %v610
          %612 = vdwg.mxu0
          %v613 = vmax.f32 %v605, 0.0
          %v614 = vmax.f32 %v607, 0.0
          %v615 = vmax.f32 %v609, 0.0
          %v616 = vmax.f32 %v611, 0.0
          %v617 = vld [vmem:[#allocation6] sm:$0xff]
          %v618 = vld [vmem:[#allocation6 + $0x8] sm:$0xff]
          %v619 = vld [vmem:[#allocation6 + $0x10] sm:$0xff]
          %v620 = vld [vmem:[#allocation6 + $0x18] sm:$0xff]
          %v621 = vld [vmem:[#allocation6 + $0x20] sm:$0xff]
          %v622 = vld [vmem:[#allocation6 + $0x28] sm:$0xff]
          %v623 = vld [vmem:[#allocation6 + $0x30] sm:$0xff]
          %v624 = vld [vmem:[#allocation6 + $0x38] sm:$0xff]
          %v625 = vld [vmem:[#allocation6 + $0x40] sm:$0xff]
          %v626 = vld [vmem:[#allocation6 + $0x48] sm:$0xff]
          %v627 = vld [vmem:[#allocation6 + $0x50] sm:$0xff]
          %v628 = vld [vmem:[#allocation6 + $0x58] sm:$0xff]
          %v629 = vld [vmem:[#allocation6 + $0x60] sm:$0xff]
          %v630 = vld [vmem:[#allocation6 + $0x68] sm:$0xff]
          %v631 = vld [vmem:[#allocation6 + $0x70] sm:$0xff]
          %v632 = vld [vmem:[#allocation6 + $0x78] sm:$0xff]
          %v633 = vld [vmem:[#allocation6 + $0x80] sm:$0xff]
          %v634 = vld [vmem:[#allocation6 + $0x88] sm:$0xff]
          %v635 = vld [vmem:[#allocation6 + $0x90] sm:$0xff]
          %v636 = vld [vmem:[#allocation6 + $0x98] sm:$0xff]
          %v637 = vld [vmem:[#allocation6 + $0xa0] sm:$0xff]
          %v638 = vld [vmem:[#allocation6 + $0xa8] sm:$0xff]
          %v639 = vld [vmem:[#allocation6 + $0xb0] sm:$0xff]
          %v640 = vld [vmem:[#allocation6 + $0xb8] sm:$0xff]
          %v641 = vld [vmem:[#allocation6 + $0xc0] sm:$0xff]
          %v642 = vld [vmem:[#allocation6 + $0xc8] sm:$0xff]
          %v643 = vld [vmem:[#allocation6 + $0xd0] sm:$0xff]
          %v644 = vld [vmem:[#allocation6 + $0xd8] sm:$0xff]
          %v645 = vld [vmem:[#allocation6 + $0xe0] sm:$0xff]
          %v646 = vld [vmem:[#allocation6 + $0xe8] sm:$0xff]
          %v647 = vld [vmem:[#allocation6 + $0xf0] sm:$0xff]
          %v648 = vld [vmem:[#allocation6 + $0xf8] sm:$0xff]
          %v649 = vpack.c.bf16 %v615, %v613
          %v650 = vpack.c.bf16 %v616, %v614
          %v683 = vunpack.c.l.b16 %v617
          %v684 = vunpack.c.h.b16 %v617
          %v685 = vunpack.c.l.b16 %v618
          %v686 = vunpack.c.h.b16 %v618
          %v687 = vunpack.c.l.b16 %v619
          %v688 = vunpack.c.h.b16 %v619
          %v689 = vunpack.c.l.b16 %v620
          %v690 = vunpack.c.h.b16 %v620
          %v691 = vunpack.c.l.b16 %v621
          %v692 = vunpack.c.h.b16 %v621
          %v693 = vunpack.c.l.b16 %v622
          %v694 = vunpack.c.h.b16 %v622
          %v695 = vunpack.c.l.b16 %v623
          %v696 = vunpack.c.h.b16 %v623
          %v697 = vunpack.c.l.b16 %v624
          %v698 = vunpack.c.h.b16 %v624
          %v699 = vunpack.c.l.b16 %v625
          %v700 = vunpack.c.h.b16 %v625
          %v701 = vunpack.c.l.b16 %v626
          %v702 = vunpack.c.h.b16 %v626
          %v703 = vunpack.c.l.b16 %v627
          %v704 = vunpack.c.h.b16 %v627
          %v705 = vunpack.c.l.b16 %v628
          %v706 = vunpack.c.h.b16 %v628
          %v707 = vunpack.c.l.b16 %v629
          %v708 = vunpack.c.h.b16 %v629
          %v709 = vunpack.c.l.b16 %v630
          %v710 = vunpack.c.h.b16 %v630
          %v711 = vunpack.c.l.b16 %v631
          %v712 = vunpack.c.h.b16 %v631
          %v713 = vunpack.c.l.b16 %v632
          %v714 = vunpack.c.h.b16 %v632
          %v715 = vunpack.c.l.b16 %v633
          %v716 = vunpack.c.h.b16 %v633
          %v717 = vunpack.c.l.b16 %v634
          %v718 = vunpack.c.h.b16 %v634
          %v719 = vunpack.c.l.b16 %v635
          %v720 = vunpack.c.h.b16 %v635
          %v721 = vunpack.c.l.b16 %v636
          %v722 = vunpack.c.h.b16 %v636
          %v723 = vunpack.c.l.b16 %v637
          %v724 = vunpack.c.h.b16 %v637
          %v725 = vunpack.c.l.b16 %v638
          %v726 = vunpack.c.h.b16 %v638
          %v727 = vunpack.c.l.b16 %v639
          %v728 = vunpack.c.h.b16 %v639
          %v729 = vunpack.c.l.b16 %v640
          %v730 = vunpack.c.h.b16 %v640
          %v731 = vunpack.c.l.b16 %v641
          %v732 = vunpack.c.h.b16 %v641
          %v733 = vunpack.c.l.b16 %v642
          %v734 = vunpack.c.h.b16 %v642
          %v735 = vunpack.c.l.b16 %v643
          %v736 = vunpack.c.h.b16 %v643
          %v737 = vunpack.c.l.b16 %v644
          %v738 = vunpack.c.h.b16 %v644
          %v739 = vunpack.c.l.b16 %v645
          %v740 = vunpack.c.h.b16 %v645
          %v741 = vunpack.c.l.b16 %v646
          %v742 = vunpack.c.h.b16 %v646
          %v743 = vunpack.c.l.b16 %v647
          %v744 = vunpack.c.h.b16 %v647
          %v745 = vunpack.c.l.b16 %v648
          %v746 = vunpack.c.h.b16 %v648
          %v747 = vpack.c.b16 %v685, %v683
          %v748 = vpack.c.b16 %v686, %v684
          %v749 = vpack.c.b16 %v689, %v687
          %v750 = vpack.c.b16 %v690, %v688
          %v751 = vpack.c.b16 %v693, %v691
          %v752 = vpack.c.b16 %v694, %v692
          %v753 = vpack.c.b16 %v697, %v695
          %v754 = vpack.c.b16 %v698, %v696
          %v755 = vpack.c.b16 %v701, %v699
          %v756 = vpack.c.b16 %v702, %v700
          %v757 = vpack.c.b16 %v705, %v703
          %v758 = vpack.c.b16 %v706, %v704
          %v759 = vpack.c.b16 %v709, %v707
          %v760 = vpack.c.b16 %v710, %v708
          %v761 = vpack.c.b16 %v713, %v711
          %v762 = vpack.c.b16 %v714, %v712
          %v763 = vpack.c.b16 %v717, %v715
          %v764 = vpack.c.b16 %v718, %v716
          %v765 = vpack.c.b16 %v721, %v719
          %v766 = vpack.c.b16 %v722, %v720
          %v767 = vpack.c.b16 %v725, %v723
          %v768 = vpack.c.b16 %v726, %v724
          %v769 = vpack.c.b16 %v729, %v727
          %v770 = vpack.c.b16 %v730, %v728
          %v771 = vpack.c.b16 %v733, %v731
          %v772 = vpack.c.b16 %v734, %v732
          %v773 = vpack.c.b16 %v737, %v735
          %v774 = vpack.c.b16 %v738, %v736
          %v775 = vpack.c.b16 %v741, %v739
          %v776 = vpack.c.b16 %v742, %v740
          %v777 = vpack.c.b16 %v745, %v743
          %v778 = vpack.c.b16 %v746, %v744
          %811 = vmatprep.subr.bf16.mxu0 %v748
          %812 = vmatpush1.bf16.msra.mxu0 %v747
          %813 = vmatprep.subr.bf16.mxu0 %v750
          %814 = vmatpush1.bf16.msra.mxu0 %v749
          %815 = vmatprep.subr.bf16.mxu0 %v752
          %816 = vmatpush1.bf16.msra.mxu0 %v751
          %817 = vmatprep.subr.bf16.mxu0 %v754
          %818 = vmatpush1.bf16.msra.mxu0 %v753
          %819 = vmatprep.subr.bf16.mxu0 %v756
          %820 = vmatpush1.bf16.msra.mxu0 %v755
          %821 = vmatprep.subr.bf16.mxu0 %v758
          %822 = vmatpush1.bf16.msra.mxu0 %v757
          %823 = vmatprep.subr.bf16.mxu0 %v760
          %824 = vmatpush1.bf16.msra.mxu0 %v759
          %825 = vmatprep.subr.bf16.mxu0 %v762
          %826 = vmatpush1.bf16.msra.mxu0 %v761
          %827 = vmatprep.subr.bf16.mxu0 %v764
          %828 = vmatpush1.bf16.msra.mxu0 %v763
          %829 = vmatprep.subr.bf16.mxu0 %v766
          %830 = vmatpush1.bf16.msra.mxu0 %v765
          %831 = vmatprep.subr.bf16.mxu0 %v768
          %832 = vmatpush1.bf16.msra.mxu0 %v767
          %833 = vmatprep.subr.bf16.mxu0 %v770
          %834 = vmatpush1.bf16.msra.mxu0 %v769
          %835 = vmatprep.subr.bf16.mxu0 %v772
          %836 = vmatpush1.bf16.msra.mxu0 %v771
          %837 = vmatprep.subr.bf16.mxu0 %v774
          %838 = vmatpush1.bf16.msra.mxu0 %v773
          %839 = vmatprep.subr.bf16.mxu0 %v776
          %840 = vmatpush1.bf16.msra.mxu0 %v775
          %841 = vmatprep.subr.bf16.mxu0 %v778
          %842 = vmatpush1.bf16.msra.mxu0 %v777
          %843 = vmatprep.mubr.bf16.mxu0 %v650
          %844 = vmatmul.mubr.bf16.gmra.mrb[0].mxu0 %v649
          %v845 = vpop.f32.mrb[0].mxu0
          %v846 = vadd.f32 0.0, %v845
          %v847 = vpop.f32.mrb[0].mxu0
          %v848 = vadd.f32 0.0, %v847
          %v849 = vpop.f32.mrb[0].mxu0
          %v850 = vadd.f32 0.0, %v849
          %v851 = vpop.f32.mrb[0].mxu0
          %v852 = vadd.f32 0.0, %v851
          %853 = vdwg.mxu0
          %v854 = vld [vmem:[#allocation8] sm:$0xf]
          %855 = vadd.xlane.f32.xlu0 %v846
          %v856 = vpop.xlane.xlu0 %855
          %857 = vadd.xlane.f32.xlu0 %v850
          %v858 = vpop.xlane.xlu0 %857
          %v859 = vmul.f32 %v856, 0.03125
          %v860 = vmul.f32 %v858, 0.03125
          %v861 = vsub.f32 %v846, %v859
          %v862 = vsub.f32 %v850, %v860
          %v863 = vsel %vm529, 1, 0
          %vm864 = vcmp.eq.s32.totalorder %v863, 1
          %v865 = vsel %vm864, %v861, 0.0
          %v866 = vsel %vm864, %v862, 0.0
          %v867 = vmul.f32 %v865, %v865
          %v868 = vmul.f32 %v866, %v866
          %869 = vadd.xlane.f32.xlu0 %v867
          %v870 = vpop.xlane.xlu0 %869
          %871 = vadd.xlane.f32.xlu0 %v868
          %v872 = vpop.xlane.xlu0 %871
          %v873 = vmul.f32 %v870, 0.03125
          %v874 = vmul.f32 %v872, 0.03125
          %v875 = vadd.f32 %v873, 1e-05
          %v876 = vadd.f32 %v874, 1e-05
          %v877 = vrsqrt.pop %v875
          %v878 = vrsqrt.pop %v876
          %v879 = vmul.f32 %v861, %v877
          %v880 = vmul.f32 %v862, %v878
          %v881 = vlaneseq
          %v882 = vshrl.u32 %v881, 7
          %v883 = vsub.s32 0, %v882
          %v884 = vrot.slane %v854, %v883
          %v885 = vmul.f32 %v879, %v884
          %v886 = vmul.f32 %v880, %v884
          %v887 = vlaneseq
          %v888 = vshrl.u32 %v887, 7
          %v889 = vsub.s32 1, %v888
          %v890 = vrot.slane %v854, %v889
          %v891 = vadd.f32 %v885, %v890
          %v892 = vadd.f32 %v886, %v890
          %893 = vadd.xlane.f32.xlu0 %v848
          %v894 = vpop.xlane.xlu0 %893
          %895 = vadd.xlane.f32.xlu0 %v852
          %v896 = vpop.xlane.xlu0 %895
          %v897 = vmul.f32 %v894, 0.03125
          %v898 = vmul.f32 %v896, 0.03125
          %v899 = vsub.f32 %v848, %v897
          %v900 = vsub.f32 %v852, %v898
          %v901 = vsel %vm864, %v899, 0.0
          %v902 = vsel %vm864, %v900, 0.0
          %v903 = vmul.f32 %v901, %v901
          %v904 = vmul.f32 %v902, %v902
          %905 = vadd.xlane.f32.xlu0 %v903
          %v906 = vpop.xlane.xlu0 %905
          %907 = vadd.xlane.f32.xlu0 %v904
          %v908 = vpop.xlane.xlu0 %907
          %v909 = vmul.f32 %v906, 0.03125
          %v910 = vmul.f32 %v908, 0.03125
          %v911 = vadd.f32 %v909, 1e-05
          %v912 = vadd.f32 %v910, 1e-05
          %v913 = vrsqrt.pop %v911
          %v914 = vrsqrt.pop %v912
          %v915 = vmul.f32 %v899, %v913
          %v916 = vmul.f32 %v900, %v914
          %v917 = vlaneseq
          %v918 = vshrl.u32 %v917, 7
          %v919 = vsub.s32 2, %v918
          %v920 = vrot.slane %v854, %v919
          %v921 = vmul.f32 %v915, %v920
          %v922 = vmul.f32 %v916, %v920
          %v923 = vlaneseq
          %v924 = vshrl.u32 %v923, 7
          %v925 = vsub.s32 3, %v924
          %v926 = vrot.slane %v854, %v925
          %v927 = vadd.f32 %v921, %v926
          %v928 = vadd.f32 %v922, %v926
          %v929 = vadd.f32 %v891, %v927
          %v930 = vadd.f32 %v892, %v928
          %v931 = vmax.f32 %v929, 0.0
          %v932 = vmax.f32 %v930, 0.0
          %v933 = vld [vmem:[%s1] sm:$0xff]
          %v934 = vld [vmem:[%s1 + $0x8] sm:$0xff]
          %v935 = vadd.f32 %v931, %v933
          %v936 = vadd.f32 %v932, %v934
          %v937 = vld [vmem:[%s7] sm:$0x3]
          %v938 = vld [vmem:[#allocation9] sm:$0xf]
          %v939 = vld [vmem:[#allocation9 + $0x4] sm:$0xf]
          %v940 = vld [vmem:[#allocation9 + $0x8] sm:$0xf]
          %v941 = vld [vmem:[#allocation9 + $0xc] sm:$0xf]
          %v942 = vld [vmem:[#allocation9 + $0x10] sm:$0xf]
          %v943 = vld [vmem:[#allocation9 + $0x14] sm:$0xf]
          %v944 = vld [vmem:[#allocation9 + $0x18] sm:$0xf]
          %v945 = vld [vmem:[#allocation9 + $0x1c] sm:$0xf]
          %v946 = vld [vmem:[#allocation9 + $0x20] sm:$0xf]
          %v947 = vld [vmem:[#allocation9 + $0x24] sm:$0xf]
          %v948 = vld [vmem:[#allocation9 + $0x28] sm:$0xf]
          %v949 = vld [vmem:[#allocation9 + $0x2c] sm:$0xf]
          %v950 = vld [vmem:[#allocation9 + $0x30] sm:$0xf]
          %v951 = vld [vmem:[#allocation9 + $0x34] sm:$0xf]
          %v952 = vld [vmem:[#allocation9 + $0x38] sm:$0xf]
          %v953 = vld [vmem:[#allocation9 + $0x3c] sm:$0xf]
          %v954 = vpack.c.bf16 %v936, %v935
          %v971 = vunpack.c.l.b16 %v938
          %v972 = vunpack.c.l.b16 %v939
          %v973 = vunpack.c.l.b16 %v940
          %v974 = vunpack.c.l.b16 %v941
          %v975 = vunpack.c.l.b16 %v942
          %v976 = vunpack.c.l.b16 %v943
          %v977 = vunpack.c.l.b16 %v944
          %v978 = vunpack.c.l.b16 %v945
          %v979 = vunpack.c.l.b16 %v946
          %v980 = vunpack.c.l.b16 %v947
          %v981 = vunpack.c.l.b16 %v948
          %v982 = vunpack.c.l.b16 %v949
          %v983 = vunpack.c.l.b16 %v950
          %v984 = vunpack.c.l.b16 %v951
          %v985 = vunpack.c.l.b16 %v952
          %v986 = vunpack.c.l.b16 %v953
          %v987 = vpack.c.b16 %v972, %v971
          %v988 = vpack.c.b16 %v974, %v973
          %v989 = vpack.c.b16 %v976, %v975
          %v990 = vpack.c.b16 %v978, %v977
          %v991 = vpack.c.b16 %v980, %v979
          %v992 = vpack.c.b16 %v982, %v981
          %v993 = vpack.c.b16 %v984, %v983
          %v994 = vpack.c.b16 %v986, %v985
          %1003 = vmatprep.subr.bf16.mxu0 0
          %1004 = vmatpush1.bf16.msra.mxu0 %v987
          %1005 = vmatprep.subr.bf16.mxu0 0
          %1006 = vmatpush1.bf16.msra.mxu0 %v988
          %1007 = vmatprep.subr.bf16.mxu0 0
          %1008 = vmatpush1.bf16.msra.mxu0 %v989
          %1009 = vmatprep.subr.bf16.mxu0 0
          %1010 = vmatpush1.bf16.msra.mxu0 %v990
          %1011 = vmatprep.subr.bf16.mxu0 0
          %1012 = vmatpush1.bf16.msra.mxu0 %v991
          %1013 = vmatprep.subr.bf16.mxu0 0
          %1014 = vmatpush1.bf16.msra.mxu0 %v992
          %1015 = vmatprep.subr.bf16.mxu0 0
          %1016 = vmatpush1.bf16.msra.mxu0 %v993
          %1017 = vmatprep.subr.bf16.mxu0 0
          %1018 = vmatpush1.bf16.msra.mxu0 %v994
          %1019 = vmatprep.subr.bf16.mxu0 0
          %1020 = vmatpush1.bf16.msra.mxu0 0
          %1021 = vmatprep.subr.bf16.mxu0 0
          %1022 = vmatpush1.bf16.msra.mxu0 0
          %1023 = vmatprep.subr.bf16.mxu0 0
          %1024 = vmatpush1.bf16.msra.mxu0 0
          %1025 = vmatprep.subr.bf16.mxu0 0
          %1026 = vmatpush1.bf16.msra.mxu0 0
          %1027 = vmatprep.subr.bf16.mxu0 0
          %1028 = vmatpush1.bf16.msra.mxu0 0
          %1029 = vmatprep.subr.bf16.mxu0 0
          %1030 = vmatpush1.bf16.msra.mxu0 0
          %1031 = vmatprep.subr.bf16.mxu0 0
          %1032 = vmatpush1.bf16.msra.mxu0 0
          %1033 = vmatprep.subr.bf16.mxu0 0
          %1034 = vmatpush1.bf16.msra.mxu0 0
          %1035 = vmatprep.mubr.bf16.mxu0 0
          %1036 = vmatmul.mubr.bf16.gmra.mrb[0].mxu0 %v954
          %v1037 = vpop.f32.mrb[0].mxu0
          %v1038 = vadd.f32 0.0, %v1037
          %v1039 = vpop.f32.mrb[0].mxu0
          %v1040 = vpop.f32.mrb[0].mxu0
          %v1041 = vadd.f32 0.0, %v1040
          %v1042 = vpop.f32.mrb[0].mxu0
          %1043 = vdwg.mxu0
          %1044 = vadd.xlane.f32.xlu0 %v1038
          %v1045 = vpop.xlane.xlu0 %1044
          %1046 = vadd.xlane.f32.xlu0 %v1041
          %v1047 = vpop.xlane.xlu0 %1046
          %v1048 = vmul.f32 %v1045, 0.03125
          %v1049 = vmul.f32 %v1047, 0.03125
          %v1050 = vsub.f32 %v1038, %v1048
          %v1051 = vsub.f32 %v1041, %v1049
          %v1052 = vsel %vm864, %v1050, 0.0
          %v1053 = vsel %vm864, %v1051, 0.0
          %v1054 = vmul.f32 %v1052, %v1052
          %v1055 = vmul.f32 %v1053, %v1053
          %1056 = vadd.xlane.f32.xlu0 %v1054
          %v1057 = vpop.xlane.xlu0 %1056
          %1058 = vadd.xlane.f32.xlu0 %v1055
          %v1059 = vpop.xlane.xlu0 %1058
          %v1060 = vmul.f32 %v1057, 0.03125
          %v1061 = vmul.f32 %v1059, 0.03125
          %v1062 = vadd.f32 %v1060, 1e-05
          %v1063 = vadd.f32 %v1061, 1e-05
          %v1064 = vrsqrt.pop %v1062
          %v1065 = vrsqrt.pop %v1063
          %v1066 = vmul.f32 %v1050, %v1064
          %v1067 = vmul.f32 %v1051, %v1065
          %v1068 = vlaneseq
          %v1069 = vshrl.u32 %v1068, 7
          %v1070 = vsub.s32 0, %v1069
          %v1071 = vrot.slane %v937, %v1070
          %v1072 = vmul.f32 %v1066, %v1071
          %v1073 = vmul.f32 %v1067, %v1071
          %v1074 = vlaneseq
          %v1075 = vshrl.u32 %v1074, 7
          %v1076 = vsub.s32 1, %v1075
          %v1077 = vrot.slane %v937, %v1076
          %v1078 = vadd.f32 %v1072, %v1077
          %v1079 = vadd.f32 %v1073, %v1077
          %v1080 = vmax.f32 %v1078, 0.0
          %v1081 = vmax.f32 %v1079, 0.0
          %1082 = vst [vmem:[#allocation2] sm:$0xff] %v1080
          %1083 = vst [vmem:[#allocation2 + $0x8] sm:$0xff] %v1081
        $region96: #{tpu_custom_call.1} parent=67 // pred_fallthru
          _
        %v1084 = vld [vmem:[#allocation2] sm:$0xff]
        %v1085 = vld [vmem:[#allocation2 + $0x8] sm:$0xff]
        %v1086 = vld [vmem:[%s468] sm:$0xff]
        %v1087 = vld [vmem:[%s468 + $0x8] sm:$0xff]
        %v1088 = vld [vmem:[%s468 + $0x10] sm:$0xff]
        %v1089 = vld [vmem:[%s468 + $0x18] sm:$0xf]
        %v1090 = vld [vmem:[%s468 + $0x1c] sm:$0xff]
        %v1091 = vld [vmem:[%s468 + $0x24] sm:$0xff]
        %v1092 = vld [vmem:[%s468 + $0x2c] sm:$0xff]
        %v1093 = vld [vmem:[%s468 + $0x34] sm:$0xf]
        %v1094 = vld [vmem:[%s468 + $0x38] sm:$0xff]
        %v1095 = vld [vmem:[%s468 + $0x40] sm:$0xff]
        %v1096 = vld [vmem:[%s468 + $0x48] sm:$0xff]
        %v1097 = vld [vmem:[%s468 + $0x50] sm:$0xf]
        %v1098 = vld [vmem:[%s468 + $0x54] sm:$0xff]
        %v1099 = vld [vmem:[%s468 + $0x5c] sm:$0xff]
        %v1100 = vld [vmem:[%s468 + $0x64] sm:$0xff]
        %v1101 = vld [vmem:[%s468 + $0x6c] sm:$0xf]
        %v1102 = vld [vmem:[%s468 + $0x70] sm:$0xff]
        %v1103 = vld [vmem:[%s468 + $0x78] sm:$0xff]
        %v1104 = vld [vmem:[%s468 + $0x80] sm:$0xff]
        %v1105 = vld [vmem:[%s468 + $0x88] sm:$0xf]
        %v1106 = vld [vmem:[%s468 + $0x8c] sm:$0xff]
        %v1107 = vld [vmem:[%s468 + $0x94] sm:$0xff]
        %v1108 = vld [vmem:[%s468 + $0x9c] sm:$0xff]
        %v1109 = vld [vmem:[%s468 + $0xa4] sm:$0xf]
        %v1110 = vld [vmem:[%s468 + $0xa8] sm:$0xff]
        %v1111 = vld [vmem:[%s468 + $0xb0] sm:$0xff]
        %v1112 = vld [vmem:[%s468 + $0xb8] sm:$0xff]
        %v1113 = vld [vmem:[%s468 + $0xc0] sm:$0xf]
        %v1114 = vld [vmem:[%s468 + $0xc4] sm:$0xff]
        %v1115 = vld [vmem:[%s468 + $0xcc] sm:$0xff]
        %v1116 = vld [vmem:[%s468 + $0xd4] sm:$0xff]
        %v1117 = vld [vmem:[%s468 + $0xdc] sm:$0xf]
        %v1118 = vld [vmem:[%s468 + $0xe0] sm:$0xff]
        %v1119 = vld [vmem:[%s468 + $0xe8] sm:$0xff]
        %v1120 = vld [vmem:[%s468 + $0xf0] sm:$0xff]
        %v1121 = vld [vmem:[%s468 + $0xf8] sm:$0xf]
        %v1122 = vld [vmem:[%s468 + $0xfc] sm:$0xff]
        %v1123 = vld [vmem:[%s468 + $0x104] sm:$0xff]
        %v1124 = vld [vmem:[%s468 + $0x10c] sm:$0xff]
        %v1125 = vld [vmem:[%s468 + $0x114] sm:$0xf]
        %v1126 = vld [vmem:[%s468 + $0x118] sm:$0xff]
        %v1127 = vld [vmem:[%s468 + $0x120] sm:$0xff]
        %v1128 = vld [vmem:[%s468 + $0x128] sm:$0xff]
        %v1129 = vld [vmem:[%s468 + $0x130] sm:$0xf]
        %v1130 = vld [vmem:[%s468 + $0x134] sm:$0xff]
        %v1131 = vld [vmem:[%s468 + $0x13c] sm:$0xff]
        %v1132 = vld [vmem:[%s468 + $0x144] sm:$0xff]
        %v1133 = vld [vmem:[%s468 + $0x14c] sm:$0xf]
        %v1134 = vld [vmem:[%s468 + $0x150] sm:$0xff]
        %v1135 = vld [vmem:[%s468 + $0x158] sm:$0xff]
        %v1136 = vld [vmem:[%s468 + $0x160] sm:$0xff]
        %v1137 = vld [vmem:[%s468 + $0x168] sm:$0xf]
        %v1138 = vld [vmem:[%s468 + $0x16c] sm:$0xff]
        %v1139 = vld [vmem:[%s468 + $0x174] sm:$0xff]
        %v1140 = vld [vmem:[%s468 + $0x17c] sm:$0xff]
        %v1141 = vld [vmem:[%s468 + $0x184] sm:$0xf]
        %v1142 = vld [vmem:[%s468 + $0x188] sm:$0xff]
        %v1143 = vld [vmem:[%s468 + $0x190] sm:$0xff]
        %v1144 = vld [vmem:[%s468 + $0x198] sm:$0xff]
        %v1145 = vld [vmem:[%s468 + $0x1a0] sm:$0xf]
        %v1146 = vld [vmem:[%s468 + $0x1a4] sm:$0xff]
        %v1147 = vld [vmem:[%s468 + $0x1ac] sm:$0xff]
        %v1148 = vld [vmem:[%s468 + $0x1b4] sm:$0xff]
        %v1149 = vld [vmem:[%s468 + $0x1bc] sm:$0xf]
        %v1150 = vpack.c.bf16 %v1085, %v1084
        %v1215 = vunpack.c.l.b16 %v1086
        %v1216 = vunpack.c.h.b16 %v1086
        %v1217 = vunpack.c.l.b16 %v1087
        %v1218 = vunpack.c.h.b16 %v1087
        %v1219 = vunpack.c.l.b16 %v1088
        %v1220 = vunpack.c.h.b16 %v1088
        %v1221 = vunpack.c.l.b16 %v1089
        %v1222 = vunpack.c.l.b16 %v1090
        %v1223 = vunpack.c.h.b16 %v1090
        %v1224 = vunpack.c.l.b16 %v1091
        %v1225 = vunpack.c.h.b16 %v1091
        %v1226 = vunpack.c.l.b16 %v1092
        %v1227 = vunpack.c.h.b16 %v1092
        %v1228 = vunpack.c.l.b16 %v1093
        %v1229 = vunpack.c.l.b16 %v1094
        %v1230 = vunpack.c.h.b16 %v1094
        %v1231 = vunpack.c.l.b16 %v1095
        %v1232 = vunpack.c.h.b16 %v1095
        %v1233 = vunpack.c.l.b16 %v1096
        %v1234 = vunpack.c.h.b16 %v1096
        %v1235 = vunpack.c.l.b16 %v1097
        %v1236 = vunpack.c.l.b16 %v1098
        %v1237 = vunpack.c.h.b16 %v1098
        %v1238 = vunpack.c.l.b16 %v1099
        %v1239 = vunpack.c.h.b16 %v1099
        %v1240 = vunpack.c.l.b16 %v1100
        %v1241 = vunpack.c.h.b16 %v1100
        %v1242 = vunpack.c.l.b16 %v1101
        %v1243 = vunpack.c.l.b16 %v1102
        %v1244 = vunpack.c.h.b16 %v1102
        %v1245 = vunpack.c.l.b16 %v1103
        %v1246 = vunpack.c.h.b16 %v1103
        %v1247 = vunpack.c.l.b16 %v1104
        %v1248 = vunpack.c.h.b16 %v1104
        %v1249 = vunpack.c.l.b16 %v1105
        %v1250 = vunpack.c.l.b16 %v1106
        %v1251 = vunpack.c.h.b16 %v1106
        %v1252 = vunpack.c.l.b16 %v1107
        %v1253 = vunpack.c.h.b16 %v1107
        %v1254 = vunpack.c.l.b16 %v1108
        %v1255 = vunpack.c.h.b16 %v1108
        %v1256 = vunpack.c.l.b16 %v1109
        %v1257 = vunpack.c.l.b16 %v1110
        %v1258 = vunpack.c.h.b16 %v1110
        %v1259 = vunpack.c.l.b16 %v1111
        %v1260 = vunpack.c.h.b16 %v1111
        %v1261 = vunpack.c.l.b16 %v1112
        %v1262 = vunpack.c.h.b16 %v1112
        %v1263 = vunpack.c.l.b16 %v1113
        %v1264 = vunpack.c.l.b16 %v1114
        %v1265 = vunpack.c.h.b16 %v1114
        %v1266 = vunpack.c.l.b16 %v1115
        %v1267 = vunpack.c.h.b16 %v1115
        %v1268 = vunpack.c.l.b16 %v1116
        %v1269 = vunpack.c.h.b16 %v1116
        %v1270 = vunpack.c.l.b16 %v1117
        %v1271 = vunpack.c.l.b16 %v1118
        %v1272 = vunpack.c.h.b16 %v1118
        %v1273 = vunpack.c.l.b16 %v1119
        %v1274 = vunpack.c.h.b16 %v1119
        %v1275 = vunpack.c.l.b16 %v1120
        %v1276 = vunpack.c.h.b16 %v1120
        %v1277 = vunpack.c.l.b16 %v1121
        %v1278 = vunpack.c.l.b16 %v1122
        %v1279 = vunpack.c.h.b16 %v1122
        %v1280 = vunpack.c.l.b16 %v1123
        %v1281 = vunpack.c.h.b16 %v1123
        %v1282 = vunpack.c.l.b16 %v1124
        %v1283 = vunpack.c.h.b16 %v1124
        %v1284 = vunpack.c.l.b16 %v1125
        %v1285 = vunpack.c.l.b16 %v1126
        %v1286 = vunpack.c.h.b16 %v1126
        %v1287 = vunpack.c.l.b16 %v1127
        %v1288 = vunpack.c.h.b16 %v1127
        %v1289 = vunpack.c.l.b16 %v1128
        %v1290 = vunpack.c.h.b16 %v1128
        %v1291 = vunpack.c.l.b16 %v1129
        %v1292 = vunpack.c.l.b16 %v1130
        %v1293 = vunpack.c.h.b16 %v1130
        %v1294 = vunpack.c.l.b16 %v1131
        %v1295 = vunpack.c.h.b16 %v1131
        %v1296 = vunpack.c.l.b16 %v1132
        %v1297 = vunpack.c.h.b16 %v1132
        %v1298 = vunpack.c.l.b16 %v1133
        %v1299 = vunpack.c.l.b16 %v1134
        %v1300 = vunpack.c.h.b16 %v1134
        %v1301 = vunpack.c.l.b16 %v1135
        %v1302 = vunpack.c.h.b16 %v1135
        %v1303 = vunpack.c.l.b16 %v1136
        %v1304 = vunpack.c.h.b16 %v1136
        %v1305 = vunpack.c.l.b16 %v1137
        %v1306 = vunpack.c.l.b16 %v1138
        %v1307 = vunpack.c.h.b16 %v1138
        %v1308 = vunpack.c.l.b16 %v1139
        %v1309 = vunpack.c.h.b16 %v1139
        %v1310 = vunpack.c.l.b16 %v1140
        %v1311 = vunpack.c.h.b16 %v1140
        %v1312 = vunpack.c.l.b16 %v1141
        %v1313 = vunpack.c.l.b16 %v1142
        %v1314 = vunpack.c.h.b16 %v1142
        %v1315 = vunpack.c.l.b16 %v1143
        %v1316 = vunpack.c.h.b16 %v1143
        %v1317 = vunpack.c.l.b16 %v1144
        %v1318 = vunpack.c.h.b16 %v1144
        %v1319 = vunpack.c.l.b16 %v1145
        %v1320 = vunpack.c.l.b16 %v1146
        %v1321 = vunpack.c.h.b16 %v1146
        %v1322 = vunpack.c.l.b16 %v1147
        %v1323 = vunpack.c.h.b16 %v1147
        %v1324 = vunpack.c.l.b16 %v1148
        %v1325 = vunpack.c.h.b16 %v1148
        %v1326 = vunpack.c.l.b16 %v1149
        %v1327 = vpack.c.b16 %v1222, %v1215
        %v1328 = vpack.c.b16 %v1223, %v1216
        %v1329 = vpack.c.b16 %v1224, %v1217
        %v1330 = vpack.c.b16 %v1225, %v1218
        %v1331 = vpack.c.b16 %v1226, %v1219
        %v1332 = vpack.c.b16 %v1227, %v1220
        %v1333 = vpack.c.b16 %v1228, %v1221
        %v1334 = vpack.c.b16 %v1236, %v1229
        %v1335 = vpack.c.b16 %v1237, %v1230
        %v1336 = vpack.c.b16 %v1238, %v1231
        %v1337 = vpack.c.b16 %v1239, %v1232
        %v1338 = vpack.c.b16 %v1240, %v1233
        %v1339 = vpack.c.b16 %v1241, %v1234
        %v1340 = vpack.c.b16 %v1242, %v1235
        %v1341 = vpack.c.b16 %v1250, %v1243
        %v1342 = vpack.c.b16 %v1251, %v1244
        %v1343 = vpack.c.b16 %v1252, %v1245
        %v1344 = vpack.c.b16 %v1253, %v1246
        %v1345 = vpack.c.b16 %v1254, %v1247
        %v1346 = vpack.c.b16 %v1255, %v1248
        %v1347 = vpack.c.b16 %v1256, %v1249
        %v1348 = vpack.c.b16 %v1264, %v1257
        %v1349 = vpack.c.b16 %v1265, %v1258
        %v1350 = vpack.c.b16 %v1266, %v1259
        %v1351 = vpack.c.b16 %v1267, %v1260
        %v1352 = vpack.c.b16 %v1268, %v1261
        %v1353 = vpack.c.b16 %v1269, %v1262
        %v1354 = vpack.c.b16 %v1270, %v1263
        %v1355 = vpack.c.b16 %v1278, %v1271
        %v1356 = vpack.c.b16 %v1279, %v1272
        %v1357 = vpack.c.b16 %v1280, %v1273
        %v1358 = vpack.c.b16 %v1281, %v1274
        %v1359 = vpack.c.b16 %v1282, %v1275
        %v1360 = vpack.c.b16 %v1283, %v1276
        %v1361 = vpack.c.b16 %v1284, %v1277
        %v1362 = vpack.c.b16 %v1292, %v1285
        %v1363 = vpack.c.b16 %v1293, %v1286
        %v1364 = vpack.c.b16 %v1294, %v1287
        %v1365 = vpack.c.b16 %v1295, %v1288
        %v1366 = vpack.c.b16 %v1296, %v1289
        %v1367 = vpack.c.b16 %v1297, %v1290
        %v1368 = vpack.c.b16 %v1298, %v1291
        %v1369 = vpack.c.b16 %v1306, %v1299
        %v1370 = vpack.c.b16 %v1307, %v1300
        %v1371 = vpack.c.b16 %v1308, %v1301
        %v1372 = vpack.c.b16 %v1309, %v1302
        %v1373 = vpack.c.b16 %v1310, %v1303
        %v1374 = vpack.c.b16 %v1311, %v1304
        %v1375 = vpack.c.b16 %v1312, %v1305
        %v1376 = vpack.c.b16 %v1320, %v1313
        %v1377 = vpack.c.b16 %v1321, %v1314
        %v1378 = vpack.c.b16 %v1322, %v1315
        %v1379 = vpack.c.b16 %v1323, %v1316
        %v1380 = vpack.c.b16 %v1324, %v1317
        %v1381 = vpack.c.b16 %v1325, %v1318
        %v1382 = vpack.c.b16 %v1326, %v1319
        %1439 = vmatprep.subr.bf16.mxu0 %v1328
        %1440 = vmatpush1.bf16.msra.mxu0 %v1327
        %1441 = vmatprep.subr.bf16.mxu0 %v1335
        %1442 = vmatpush1.bf16.msra.mxu0 %v1334
        %1443 = vmatprep.subr.bf16.mxu0 %v1342
        %1444 = vmatpush1.bf16.msra.mxu0 %v1341
        %1445 = vmatprep.subr.bf16.mxu0 %v1349
        %1446 = vmatpush1.bf16.msra.mxu0 %v1348
        %1447 = vmatprep.subr.bf16.mxu0 %v1356
        %1448 = vmatpush1.bf16.msra.mxu0 %v1355
        %1449 = vmatprep.subr.bf16.mxu0 %v1363
        %1450 = vmatpush1.bf16.msra.mxu0 %v1362
        %1451 = vmatprep.subr.bf16.mxu0 %v1370
        %1452 = vmatpush1.bf16.msra.mxu0 %v1369
        %1453 = vmatprep.subr.bf16.mxu0 %v1377
        %1454 = vmatpush1.bf16.msra.mxu0 %v1376
        %1455 = vmatprep.subr.bf16.mxu0 0
        %1456 = vmatpush1.bf16.msra.mxu0 0
        %1457 = vmatprep.subr.bf16.mxu0 0
        %1458 = vmatpush1.bf16.msra.mxu0 0
        %1459 = vmatprep.subr.bf16.mxu0 0
        %1460 = vmatpush1.bf16.msra.mxu0 0
        %1461 = vmatprep.subr.bf16.mxu0 0
        %1462 = vmatpush1.bf16.msra.mxu0 0
        %1463 = vmatprep.subr.bf16.mxu0 0
        %1464 = vmatpush1.bf16.msra.mxu0 0
        %1465 = vmatprep.subr.bf16.mxu0 0
        %1466 = vmatpush1.bf16.msra.mxu0 0
        %1467 = vmatprep.subr.bf16.mxu0 0
        %1468 = vmatpush1.bf16.msra.mxu0 0
        %1469 = vmatprep.subr.bf16.mxu0 0
        %1470 = vmatpush1.bf16.msra.mxu0 0
        %1471 = vmatprep.mubr.bf16.mxu0 0
        %1472 = vmatmul.mubr.bf16.gmra.mrb[0].mxu0 %v1150
        %v1473 = vpop.f32.mrb[0].mxu0
        %v1474 = vadd.f32 0.0, %v1473
        %v1475 = vpop.f32.mrb[0].mxu0
        %v1476 = vadd.f32 0.0, %v1475
        %v1477 = vpop.f32.mrb[0].mxu0
        %v1478 = vadd.f32 0.0, %v1477
        %v1479 = vpop.f32.mrb[0].mxu0
        %v1480 = vadd.f32 0.0, %v1479
        %1481 = vdwg.mxu0
        %1482 = vmatprep.subr.bf16.mxu0 %v1330
        %1483 = vmatpush1.bf16.msra.mxu0 %v1329
        %1484 = vmatprep.subr.bf16.mxu0 %v1337
        %1485 = vmatpush1.bf16.msra.mxu0 %v1336
        %1486 = vmatprep.subr.bf16.mxu0 %v1344
        %1487 = vmatpush1.bf16.msra.mxu0 %v1343
        %1488 = vmatprep.subr.bf16.mxu0 %v1351
        %1489 = vmatpush1.bf16.msra.mxu0 %v1350
        %1490 = vmatprep.subr.bf16.mxu0 %v1358
        %1491 = vmatpush1.bf16.msra.mxu0 %v1357
        %1492 = vmatprep.subr.bf16.mxu0 %v1365
        %1493 = vmatpush1.bf16.msra.mxu0 %v1364
        %1494 = vmatprep.subr.bf16.mxu0 %v1372
        %1495 = vmatpush1.bf16.msra.mxu0 %v1371
        %1496 = vmatprep.subr.bf16.mxu0 %v1379
        %1497 = vmatpush1.bf16.msra.mxu0 %v1378
        %1498 = vmatprep.subr.bf16.mxu0 0
        %1499 = vmatpush1.bf16.msra.mxu0 0
        %1500 = vmatprep.subr.bf16.mxu0 0
        %1501 = vmatpush1.bf16.msra.mxu0 0
        %1502 = vmatprep.subr.bf16.mxu0 0
        %1503 = vmatpush1.bf16.msra.mxu0 0
        %1504 = vmatprep.subr.bf16.mxu0 0
        %1505 = vmatpush1.bf16.msra.mxu0 0
        %1506 = vmatprep.subr.bf16.mxu0 0
        %1507 = vmatpush1.bf16.msra.mxu0 0
        %1508 = vmatprep.subr.bf16.mxu0 0
        %1509 = vmatpush1.bf16.msra.mxu0 0
        %1510 = vmatprep.subr.bf16.mxu0 0
        %1511 = vmatpush1.bf16.msra.mxu0 0
        %1512 = vmatprep.subr.bf16.mxu0 0
        %1513 = vmatpush1.bf16.msra.mxu0 0
        %1514 = vmatprep.mubr.bf16.mxu0 0
        %1515 = vmatmul.mubr.bf16.gmra.mrb[0].mxu0 %v1150
        %v1516 = vpop.f32.mrb[0].mxu0
        %v1517 = vadd.f32 0.0, %v1516
        %v1518 = vpop.f32.mrb[0].mxu0
        %v1519 = vadd.f32 0.0, %v1518
        %v1520 = vpop.f32.mrb[0].mxu0
        %v1521 = vadd.f32 0.0, %v1520
        %v1522 = vpop.f32.mrb[0].mxu0
        %v1523 = vadd.f32 0.0, %v1522
        %1524 = vdwg.mxu0
        %1525 = vmatprep.subr.bf16.mxu0 %v1332
        %1526 = vmatpush1.bf16.msra.mxu0 %v1331
        %1527 = vmatprep.subr.bf16.mxu0 %v1339
        %1528 = vmatpush1.bf16.msra.mxu0 %v1338
        %1529 = vmatprep.subr.bf16.mxu0 %v1346
        %1530 = vmatpush1.bf16.msra.mxu0 %v1345
        %1531 = vmatprep.subr.bf16.mxu0 %v1353
        %1532 = vmatpush1.bf16.msra.mxu0 %v1352
        %1533 = vmatprep.subr.bf16.mxu0 %v1360
        %1534 = vmatpush1.bf16.msra.mxu0 %v1359
        %1535 = vmatprep.subr.bf16.mxu0 %v1367
        %1536 = vmatpush1.bf16.msra.mxu0 %v1366
        %1537 = vmatprep.subr.bf16.mxu0 %v1374
        %1538 = vmatpush1.bf16.msra.mxu0 %v1373
        %1539 = vmatprep.subr.bf16.mxu0 %v1381
        %1540 = vmatpush1.bf16.msra.mxu0 %v1380
        %1541 = vmatprep.subr.bf16.mxu0 0
        %1542 = vmatpush1.bf16.msra.mxu0 0
        %1543 = vmatprep.subr.bf16.mxu0 0
        %1544 = vmatpush1.bf16.msra.mxu0 0
        %1545 = vmatprep.subr.bf16.mxu0 0
        %1546 = vmatpush1.bf16.msra.mxu0 0
        %1547 = vmatprep.subr.bf16.mxu0 0
        %1548 = vmatpush1.bf16.msra.mxu0 0
        %1549 = vmatprep.subr.bf16.mxu0 0
        %1550 = vmatpush1.bf16.msra.mxu0 0
        %1551 = vmatprep.subr.bf16.mxu0 0
        %1552 = vmatpush1.bf16.msra.mxu0 0
        %1553 = vmatprep.subr.bf16.mxu0 0
        %1554 = vmatpush1.bf16.msra.mxu0 0
        %1555 = vmatprep.subr.bf16.mxu0 0
        %1556 = vmatpush1.bf16.msra.mxu0 0
        %1557 = vmatprep.mubr.bf16.mxu0 0
        %1558 = vmatmul.mubr.bf16.gmra.mrb[0].mxu0 %v1150
        %v1559 = vpop.f32.mrb[0].mxu0
        %v1560 = vadd.f32 0.0, %v1559
        %v1561 = vpop.f32.mrb[0].mxu0
        %v1562 = vadd.f32 0.0, %v1561
        %v1563 = vpop.f32.mrb[0].mxu0
        %v1564 = vadd.f32 0.0, %v1563
        %v1565 = vpop.f32.mrb[0].mxu0
        %v1566 = vadd.f32 0.0, %v1565
        %1567 = vdwg.mxu0
        %1568 = vmatprep.subr.bf16.mxu0 0
        %1569 = vmatpush1.bf16.msra.mxu0 %v1333
        %1570 = vmatprep.subr.bf16.mxu0 0
        %1571 = vmatpush1.bf16.msra.mxu0 %v1340
        %1572 = vmatprep.subr.bf16.mxu0 0
        %1573 = vmatpush1.bf16.msra.mxu0 %v1347
        %1574 = vmatprep.subr.bf16.mxu0 0
        %1575 = vmatpush1.bf16.msra.mxu0 %v1354
        %1576 = vmatprep.subr.bf16.mxu0 0
        %1577 = vmatpush1.bf16.msra.mxu0 %v1361
        %1578 = vmatprep.subr.bf16.mxu0 0
        %1579 = vmatpush1.bf16.msra.mxu0 %v1368
        %1580 = vmatprep.subr.bf16.mxu0 0
        %1581 = vmatpush1.bf16.msra.mxu0 %v1375
        %1582 = vmatprep.subr.bf16.mxu0 0
        %1583 = vmatpush1.bf16.msra.mxu0 %v1382
        %1584 = vmatprep.subr.bf16.mxu0 0
        %1585 = vmatpush1.bf16.msra.mxu0 0
        %1586 = vmatprep.subr.bf16.mxu0 0
        %1587 = vmatpush1.bf16.msra.mxu0 0
        %1588 = vmatprep.subr.bf16.mxu0 0
        %1589 = vmatpush1.bf16.msra.mxu0 0
        %1590 = vmatprep.subr.bf16.mxu0 0
        %1591 = vmatpush1.bf16.msra.mxu0 0
        %1592 = vmatprep.subr.bf16.mxu0 0
        %1593 = vmatpush1.bf16.msra.mxu0 0
        %1594 = vmatprep.subr.bf16.mxu0 0
        %1595 = vmatpush1.bf16.msra.mxu0 0
        %1596 = vmatprep.subr.bf16.mxu0 0
        %1597 = vmatpush1.bf16.msra.mxu0 0
        %1598 = vmatprep.subr.bf16.mxu0 0
        %1599 = vmatpush1.bf16.msra.mxu0 0
        %1600 = vmatprep.mubr.bf16.mxu0 0
        %1601 = vmatmul.mubr.bf16.gmra.mrb[0].mxu0 %v1150
        %v1602 = vpop.f32.mrb[0].mxu0
        %v1603 = vadd.f32 0.0, %v1602
        %v1604 = vpop.f32.mrb[0].mxu0
        %v1605 = vpop.f32.mrb[0].mxu0
        %v1606 = vadd.f32 0.0, %v1605
        %v1607 = vpop.f32.mrb[0].mxu0
        %1608 = vdwg.mxu0
        %v1609 = vpack.c.bf16 %v1480, %v1476
        %v1610 = vpack.c.bf16 %v1521, %v1517
        %v1611 = vpack.c.bf16 %v1523, %v1519
        %v1612 = vpack.c.bf16 %v1564, %v1560
        %v1613 = vpack.c.bf16 %v1566, %v1562
        %v1614 = vpack.c.bf16 %v1606, %v1603
        %v1615 = vld [vmem:[%s9] sm:$0xf]
        %v1616 = vld [vmem:[%s9 + $0x4] sm:$0xf]
        %v1619 = vunpack.c.l.b16 %v1615
        %v1620 = vunpack.c.l.b16 %v1616
        %v1621 = vpack.c.b16 %v1620, %v1619
        %vm1622 = vcmask 785408
        %v1624 = vsel %vm1622, %v1621, 0
        %1626 = vmatprep.subr.bf16.mxu0 0
        %1627 = vmatpush1.bf16.msra.mxu0 %v1609
        %1628 = vmatprep.subr.bf16.mxu0 0
        %1629 = vmatpush1.bf16.msra.mxu0 %v1610
        %1630 = vmatprep.subr.bf16.mxu0 0
        %1631 = vmatpush1.bf16.msra.mxu0 %v1611
        %1632 = vmatprep.subr.bf16.mxu0 0
        %1633 = vmatpush1.bf16.msra.mxu0 %v1612
        %1634 = vmatprep.subr.bf16.mxu0 0
        %1635 = vmatpush1.bf16.msra.mxu0 %v1613
        %1636 = vmatprep.subr.bf16.mxu0 0
        %1637 = vmatpush1.bf16.msra.mxu0 %v1614
        %1638 = vmatprep.subr.bf16.mxu0 0
        %1639 = vmatpush1.bf16.msra.mxu0 0
        %1640 = vmatprep.subr.bf16.mxu0 0
        %1641 = vmatpush1.bf16.msra.mxu0 0
        %1642 = vmatprep.subr.bf16.mxu0 0
        %1643 = vmatpush1.bf16.msra.mxu0 0
        %1644 = vmatprep.subr.bf16.mxu0 0
        %1645 = vmatpush1.bf16.msra.mxu0 0
        %1646 = vmatprep.subr.bf16.mxu0 0
        %1647 = vmatpush1.bf16.msra.mxu0 0
        %1648 = vmatprep.subr.bf16.mxu0 0
        %1649 = vmatpush1.bf16.msra.mxu0 0
        %1650 = vmatprep.subr.bf16.mxu0 0
        %1651 = vmatpush1.bf16.msra.mxu0 0
        %1652 = vmatprep.subr.bf16.mxu0 0
        %1653 = vmatpush1.bf16.msra.mxu0 0
        %1654 = vmatprep.subr.bf16.mxu0 0
        %1655 = vmatpush1.bf16.msra.mxu0 0
        %1656 = vmatprep.subr.bf16.mxu0 0
        %1657 = vmatpush1.bf16.msra.mxu0 0
        %1658 = vmatprep.mubr.bf16.mxu0 0
        %1659 = vmatmul.mubr.bf16.gmra.mrb[0].mxu0 %v1624
        %v1660 = vpop.f32.mrb[0].mxu0
        %v1661 = vadd.f32 0.0, %v1660
        %v1662 = vpop.f32.mrb[0].mxu0
        %v1663 = vpop.f32.mrb[0].mxu0
        %v1664 = vadd.f32 0.0, %v1663
        %v1665 = vpop.f32.mrb[0].mxu0
        %1666 = vdwg.mxu0
        %v1667 = vadd.f32 %v1474, %v1661
        %v1668 = vadd.f32 %v1478, %v1664
        %v1669 = vld [vmem:[%s525] sm:$0xf]
        %1670 = vadd.xlane.f32.xlu0 %v1667
        %v1671 = vpop.xlane.xlu0 %1670
        %1672 = vadd.xlane.f32.xlu0 %v1668
        %v1673 = vpop.xlane.xlu0 %1672
        %v1674 = vmul.f32 %v1671, 0.03125
        %v1675 = vmul.f32 %v1673, 0.03125
        %v1676 = vsub.f32 %v1667, %v1674
        %v1677 = vsub.f32 %v1668, %v1675
        %v1678 = vsel %vm529, 1, 0
        %vm1679 = vcmp.eq.s32.totalorder %v1678, 1
        %v1680 = vsel %vm1679, %v1676, 0.0
        %v1681 = vsel %vm1679, %v1677, 0.0
        %v1682 = vmul.f32 %v1680, %v1680
        %v1683 = vmul.f32 %v1681, %v1681
        %1684 = vadd.xlane.f32.xlu0 %v1682
        %v1685 = vpop.xlane.xlu0 %1684
        %1686 = vadd.xlane.f32.xlu0 %v1683
        %v1687 = vpop.xlane.xlu0 %1686
        %v1688 = vmul.f32 %v1685, 0.03125
        %v1689 = vmul.f32 %v1687, 0.03125
        %v1690 = vadd.f32 %v1688, 1e-05
        %v1691 = vadd.f32 %v1689, 1e-05
        %v1692 = vrsqrt.pop %v1690
        %v1693 = vrsqrt.pop %v1691
        %v1694 = vmul.f32 %v1676, %v1692
        %v1695 = vmul.f32 %v1677, %v1693
        %v1696 = vlaneseq
        %v1697 = vshrl.u32 %v1696, 7
        %v1698 = vsub.s32 0, %v1697
        %v1699 = vrot.slane %v1669, %v1698
        %v1700 = vmul.f32 %v1694, %v1699
        %v1701 = vmul.f32 %v1695, %v1699
        %v1702 = vlaneseq
        %v1703 = vshrl.u32 %v1702, 7
        %v1704 = vsub.s32 1, %v1703
        %v1705 = vrot.slane %v1669, %v1704
        %v1706 = vadd.f32 %v1700, %v1705
        %v1707 = vadd.f32 %v1701, %v1705
        %v1708 = vmax.f32 %v1706, 0.0
        %v1709 = vmax.f32 %v1707, 0.0
        %v1710 = vld [vmem:[%s477] sm:$0xf]
        %v1711 = vld [vmem:[%s477 + $0x4] sm:$0xf]
        %v1712 = vld [vmem:[%s477 + $0x8] sm:$0xf]
        %v1713 = vld [vmem:[%s477 + $0xc] sm:$0xf]
        %v1714 = vld [vmem:[%s477 + $0x10] sm:$0xf]
        %v1715 = vld [vmem:[%s477 + $0x14] sm:$0xf]
        %v1716 = vld [vmem:[%s477 + $0x18] sm:$0xf]
        %v1717 = vld [vmem:[%s477 + $0x1c] sm:$0xf]
        %v1718 = vld [vmem:[%s477 + $0x20] sm:$0xf]
        %v1719 = vld [vmem:[%s477 + $0x24] sm:$0xf]
        %v1720 = vld [vmem:[%s477 + $0x28] sm:$0xf]
        %v1721 = vld [vmem:[%s477 + $0x2c] sm:$0xf]
        %v1722 = vld [vmem:[%s477 + $0x30] sm:$0xf]
        %v1723 = vld [vmem:[%s477 + $0x34] sm:$0xf]
        %v1724 = vld [vmem:[%s477 + $0x38] sm:$0xf]
        %v1725 = vld [vmem:[%s477 + $0x3c] sm:$0xf]
        %v1726 = vpack.c.bf16 %v1709, %v1708
        %v1743 = vunpack.c.l.b16 %v1710
        %v1744 = vunpack.c.l.b16 %v1711
        %v1745 = vunpack.c.l.b16 %v1712
        %v1746 = vunpack.c.l.b16 %v1713
        %v1747 = vunpack.c.l.b16 %v1714
        %v1748 = vunpack.c.l.b16 %v1715
        %v1749 = vunpack.c.l.b16 %v1716
        %v1750 = vunpack.c.l.b16 %v1717
        %v1751 = vunpack.c.l.b16 %v1718
        %v1752 = vunpack.c.l.b16 %v1719
        %v1753 = vunpack.c.l.b16 %v1720
        %v1754 = vunpack.c.l.b16 %v1721
        %v1755 = vunpack.c.l.b16 %v1722
        %v1756 = vunpack.c.l.b16 %v1723
        %v1757 = vunpack.c.l.b16 %v1724
        %v1758 = vunpack.c.l.b16 %v1725
        %v1759 = vpack.c.b16 %v1744, %v1743
        %v1760 = vpack.c.b16 %v1746, %v1745
        %v1761 = vpack.c.b16 %v1748, %v1747
        %v1762 = vpack.c.b16 %v1750, %v1749
        %v1763 = vpack.c.b16 %v1752, %v1751
        %v1764 = vpack.c.b16 %v1754, %v1753
        %v1765 = vpack.c.b16 %v1756, %v1755
        %v1766 = vpack.c.b16 %v1758, %v1757
        %1775 = vmatprep.subr.bf16.mxu0 0
        %1776 = vmatpush1.bf16.msra.mxu0 %v1759
        %1777 = vmatprep.subr.bf16.mxu0 0
        %1778 = vmatpush1.bf16.msra.mxu0 %v1760
        %1779 = vmatprep.subr.bf16.mxu0 0
        %1780 = vmatpush1.bf16.msra.mxu0 %v1761
        %1781 = vmatprep.subr.bf16.mxu0 0
        %1782 = vmatpush1.bf16.msra.mxu0 %v1762
        %1783 = vmatprep.subr.bf16.mxu0 0
        %1784 = vmatpush1.bf16.msra.mxu0 %v1763
        %1785 = vmatprep.subr.bf16.mxu0 0
        %1786 = vmatpush1.bf16.msra.mxu0 %v1764
        %1787 = vmatprep.subr.bf16.mxu0 0
        %1788 = vmatpush1.bf16.msra.mxu0 %v1765
        %1789 = vmatprep.subr.bf16.mxu0 0
        %1790 = vmatpush1.bf16.msra.mxu0 %v1766
        %1791 = vmatprep.subr.bf16.mxu0 0
        %1792 = vmatpush1.bf16.msra.mxu0 0
        %1793 = vmatprep.subr.bf16.mxu0 0
        %1794 = vmatpush1.bf16.msra.mxu0 0
        %1795 = vmatprep.subr.bf16.mxu0 0
        %1796 = vmatpush1.bf16.msra.mxu0 0
        %1797 = vmatprep.subr.bf16.mxu0 0
        %1798 = vmatpush1.bf16.msra.mxu0 0
        %1799 = vmatprep.subr.bf16.mxu0 0
        %1800 = vmatpush1.bf16.msra.mxu0 0
        %1801 = vmatprep.subr.bf16.mxu0 0
        %1802 = vmatpush1.bf16.msra.mxu0 0
        %1803 = vmatprep.subr.bf16.mxu0 0
        %1804 = vmatpush1.bf16.msra.mxu0 0
        %1805 = vmatprep.subr.bf16.mxu0 0
        %1806 = vmatpush1.bf16.msra.mxu0 0
        %1807 = vmatprep.mubr.bf16.mxu0 0
        %1808 = vmatmul.mubr.bf16.gmra.mrb[0].mxu0 %v1726
        %v1809 = vpop.f32.mrb[0].mxu0
        %v1810 = vadd.f32 0.0, %v1809
        %v1811 = vpop.f32.mrb[0].mxu0
        %v1812 = vpop.f32.mrb[0].mxu0
        %v1813 = vadd.f32 0.0, %v1812
        %v1814 = vpop.f32.mrb[0].mxu0
        %1815 = vdwg.mxu0
        %1816 = vadd.xlane.f32.xlu0 %v1810
        %v1817 = vpop.xlane.xlu0 %1816
        %1818 = vadd.xlane.f32.xlu0 %v1813
        %v1819 = vpop.xlane.xlu0 %1818
        %v1820 = vmul.f32 %v1817, 0.03125
        %v1821 = vmul.f32 %v1819, 0.03125
        %v1822 = vsub.f32 %v1810, %v1820
        %v1823 = vsub.f32 %v1813, %v1821
        %v1824 = vsel %vm1679, %v1822, 0.0
        %v1825 = vsel %vm1679, %v1823, 0.0
        %v1826 = vmul.f32 %v1824, %v1824
        %v1827 = vmul.f32 %v1825, %v1825
        %1828 = vadd.xlane.f32.xlu0 %v1826
        %v1829 = vpop.xlane.xlu0 %1828
        %1830 = vadd.xlane.f32.xlu0 %v1827
        %v1831 = vpop.xlane.xlu0 %1830
        %v1832 = vmul.f32 %v1829, 0.03125
        %v1833 = vmul.f32 %v1831, 0.03125
        %v1834 = vadd.f32 %v1832, 1e-05
        %v1835 = vadd.f32 %v1833, 1e-05
        %v1836 = vrsqrt.pop %v1834
        %v1837 = vrsqrt.pop %v1835
        %v1838 = vmul.f32 %v1822, %v1836
        %v1839 = vmul.f32 %v1823, %v1837
        %v1840 = vlaneseq
        %v1841 = vshrl.u32 %v1840, 7
        %v1842 = vsub.s32 2, %v1841
        %v1843 = vrot.slane %v1669, %v1842
        %v1844 = vmul.f32 %v1838, %v1843
        %v1845 = vmul.f32 %v1839, %v1843
        %v1846 = vlaneseq
        %v1847 = vshrl.u32 %v1846, 7
        %v1848 = vsub.s32 3, %v1847
        %v1849 = vrot.slane %v1669, %v1848
        %v1850 = vadd.f32 %v1844, %v1849
        %v1851 = vadd.f32 %v1845, %v1849
        %v1852 = vadd.f32 %v1850, %v1084
        %v1853 = vadd.f32 %v1851, %v1085
        %v1854 = vmax.f32 %v1852, 0.0
        %v1855 = vmax.f32 %v1853, 0.0
        %1856 = vst [vmem:[#allocation2] sm:$0xff] %v1854
        %1857 = vst [vmem:[#allocation2 + $0x8] sm:$0xff] %v1855
        %p1858 = scmp.eq.s32.totalorder %s27, 3
        // Predicated region
        $region97: #{tpu_custom_call.1} parent=67 // pred_check
          %p1859 = pneg %p1858
        $region98: #{tpu_custom_call.1} parent=67 // pred_check_branch
          %1861 = sbr.rel (%p1859) target = $region100
        $region99: #{tpu_custom_call.1} parent=67 // pred_region
          %1862 = vst [vmem:[#allocation13] sm:$0xff] %v1854
          %1863 = vst [vmem:[#allocation13 + $0x8] sm:$0xff] %v1855
        $region100: #{tpu_custom_call.1} parent=67 // pred_fallthru
          _
        // Predicated region
        $region101: #{tpu_custom_call.1} parent=67 // pred_check
          %p1864 = pneg %p307
        $region102: #{tpu_custom_call.1} parent=67 // pred_check_branch
          %1866 = sbr.rel (%p1864) target = $region104
        $region103: #{tpu_custom_call.1} parent=67 // pred_region
          %s1868 = ssub.s32 256, 256
          %1869 = vsyncadd [#allocation5], %s1868
          %s1870 = sshll.u32 [#allocation13], 4
          %s1871 = int_to_ptr.vmem [resolvable:$true] %s1870
          %1876 = dma.vmem_to_hbm [thread:$0]  %s1871, 256, %s12, [#allocation5], 128, 128, 8
        $region104: #{tpu_custom_call.1} parent=67 // pred_fallthru
          _
        // Predicated region
        $region105: #{tpu_custom_call.1} parent=67 // pred_check
          %p1877 = pneg %p307
        $region106: #{tpu_custom_call.1} parent=67 // pred_check_branch
          %1879 = sbr.rel (%p1877) target = $region108
        $region107: #{tpu_custom_call.1} parent=67 // pred_region
          %1880 = dma.done [#allocation5], 256
        $region108: #{tpu_custom_call.1} parent=67 // pred_fallthru
          _
      $region68: #{tpu_custom_call.1} parent=5 // pred_fallthru
        _
      %p1881 = scmp.le.s32.totalorder 2, %s22
      // Predicated region
      $region109: #{tpu_custom_call.1} parent=5 // pred_check
        %p1882 = pneg %p1881
      $region110: #{tpu_custom_call.1} parent=5 // pred_check_branch
        %1884 = sbr.rel (%p1882) target = $region112
      $region111: #{tpu_custom_call.1} parent=5 // pred_region
        %s1885 = ssub.s32 %s22, 2
      $region112: #{tpu_custom_call.1} parent=5 // pred_fallthru
        _
    $region6: #{tpu_custom_call.1} parent=1 // loop_footer
      %s26 = sadd.s32 1, %s22
    $region7: #{tpu_custom_call.1} parent=1 // loop_footer_branch
      %21 = sbr.rel target = $region3
    $region8: #{tpu_custom_call.1} parent=1 // loop_exit
      _
    %1886 = vsyncpa [#allocation4], 1
    %s1887 = scalar_lea.sflag [#allocation4], 1
    %1888 = vsyncpa %s1887, 1
    %1889 = vsyncpa [#allocation7], 1
    %1890 = vsyncpa [#allocation10], 1
    %1891 = vsyncpa [#allocation5], 1
    %s1892 = scalar_lea.sflag [#allocation5], 1
    %1893 = vsyncpa %s1892, 1

</llo_original>
